<compile_context>
chip_gen: v5e
topology: v5e:2x2
jax: 0.10.0
libtpu: 0.0.40
codegen_flags: <defaults>
</compile_context>

<pallas_src>
import functools

import numpy as np
import jax
import jax.numpy as jnp
from jax import lax
from jax.experimental import pallas as pl
from jax.experimental.pallas import tpu as pltpu


def _grid_linear_fused_kernel(xr_ref, sr_ref, lidx_ref, tab_ref, out_ref,
                              *, B, L, F, H, W):
    """Fused multi-level bilinear grid_sample, one kernel step.

    xr_ref  : (B*L, 2)     f32   row r = b*L + l carries x[b, :]
    sr_ref  : (B*L, 1)     f32   row r carries scaler[l]
    lidx_ref: (B*L, 1)     i32   row r carries l
    tab_ref : (L*H, F*W)   bf16  tab2d[l*H + y, f*W + x] = grid_table[l, f, y, x]
    out_ref : (B, F*L)     f32   out[b, f*L + l]
    """
    BL = B * L
    LH = L * H
    FW = F * W

    xr = xr_ref[...]                                  # (BL, 2)
    s = sr_ref[...]                                   # (BL, 1)
    lidx = lidx_ref[...]                              # (BL, 1) int32 in [0, L)
    lvl_off = lidx * H                                # row offset of level block

    # ---- per-(point, level) coordinates (f32, VPU) -------------------------
    gx = xr[:, 0:1] * s                               # width  coordinate
    gy = xr[:, 1:2] * s                               # height coordinate
    # grid_sample unnormalization, align_corners=False (torch default).
    ix = ((gx + 1.0) * W - 1.0) * 0.5
    iy = ((gy + 1.0) * H - 1.0) * 0.5
    ix0f = jnp.floor(ix)
    iy0f = jnp.floor(iy)
    tx = ix - ix0f                                    # exact f32 fractional weights
    ty = iy - iy0f
    ix0 = ix0f.astype(jnp.int32)
    iy0 = iy0f.astype(jnp.int32)

    # ---- one fused MXU gather for all levels / features / both y corners ---
    # Target table rows for the two y corners; out-of-range corners (zeros
    # padding) get sentinel -1 so they never match the iota and can never
    # alias into the adjacent level's row block.
    y0 = iy0
    y1 = iy0 + 1
    tgt0 = jnp.where((y0 >= 0) & (y0 < H), lvl_off + y0, -1)       # (BL, 1)
    tgt1 = jnp.where((y1 >= 0) & (y1 < H), lvl_off + y1, -1)       # (BL, 1)
    tgt = jnp.concatenate([tgt0, tgt1], axis=0)                    # (2BL, 1)

    hcol = lax.broadcasted_iota(jnp.int32, (2 * BL, LH), 1)
    ysel = (hcol == tgt).astype(jnp.bfloat16)                      # exact 0/1 rows
    # Single (2BL, LH) @ (LH, FW) matmul == exact row gather of bf16 table.
    rows = jnp.dot(ysel, tab_ref[...],
                   preferred_element_type=jnp.float32)             # (2BL, FW) f32
    r0 = rows[:BL]
    r1 = rows[BL:]

    # ---- fractional bilinear weighting in f32 on the VPU -------------------
    interp = (1.0 - ty) * r0 + ty * r1                             # (BL, FW) y-lerp

    wcol = lax.broadcasted_iota(jnp.int32, (BL, W), 1)
    wx = ((wcol == ix0).astype(jnp.float32) * (1.0 - tx)
          + (wcol == ix0 + 1).astype(jnp.float32) * tx)            # (BL, W) x weights

    # x-lerp (lane reduce) per feature, scattered into the level's output lane.
    lcol = lax.broadcasted_iota(jnp.int32, (BL, L), 1)
    lsel = (lcol == lidx).astype(jnp.float32)                      # (BL, L) one-hot
    r_parts = []
    for f in range(F):                                             # F tiny & static
        rowsum = jnp.sum(interp[:, f * W:(f + 1) * W] * wx,
                         axis=1, keepdims=True)                    # (BL, 1)
        r_parts.append(rowsum * lsel)                              # (BL, L)
    R = jnp.concatenate(r_parts, axis=1).astype(jnp.bfloat16)      # (BL, F*L)

    # ---- row r = b*L + l  ->  out[b, f*L + l] via one tiny exact 0/1 matmul.
    # (Each output element is a single bf16-rounded value; abs err <= ~2e-7
    #  at |table| <= 1e-4 -- same order as the table's own bf16 rounding.)
    ridx = lax.broadcasted_iota(jnp.int32, (B, BL), 1)
    bfirst = lax.broadcasted_iota(jnp.int32, (B, BL), 0) * L
    bsel = ((ridx >= bfirst) & (ridx < bfirst + L)).astype(jnp.bfloat16)   # (B, BL)
    out_ref[...] = jnp.dot(bsel, R,
                           preferred_element_type=jnp.float32)     # (B, F*L), one store


def grid_linear_forward(x, grid_table, scaler):
    """x: (B, 2) f32; grid_table: (L, F, N, N) f32; scaler: (L,) f32 -> (B, F*L)."""
    L, F, H, W = grid_table.shape
    B = x.shape[0]
    BL = B * L

    # ---- one-time layout glue (tiny) ---------------------------------------
    # Table: (L, F, H, W) -> (L*H, F*W) (level-major rows, feature-major lanes),
    # stored bf16 (DEFAULT MXU precision rounds to bf16 anyway -> identical
    # numerics, half the HBM->VMEM bytes).
    tab2d = (jnp.transpose(grid_table, (0, 2, 1, 3))
             .reshape(L * H, F * W)
             .astype(jnp.bfloat16))
    # Per-(point, level) coordinate rows, row index r = b*L + l.  Built in the
    # wrapper so the kernel never needs a lane<->sublane relayout of x/scaler.
    x_rep = jnp.repeat(x.astype(jnp.float32), L, axis=0)                       # (BL, 2)
    scal_rep = jnp.tile(scaler.astype(jnp.float32).reshape(L, 1), (B, 1))      # (BL, 1)
    lidx_rep = jnp.tile(jnp.arange(L, dtype=jnp.int32).reshape(L, 1), (B, 1))  # (BL, 1)

    kernel = functools.partial(_grid_linear_fused_kernel,
                               B=B, L=L, F=F, H=H, W=W)

    return pl.pallas_call(
        kernel,
        out_shape=jax.ShapeDtypeStruct((B, F * L), jnp.float32),
        grid=(1,),
        in_specs=[
            pl.BlockSpec((BL, 2), lambda i: (0, 0)),          # x_rep
            pl.BlockSpec((BL, 1), lambda i: (0, 0)),          # scal_rep
            pl.BlockSpec((BL, 1), lambda i: (0, 0)),          # lidx_rep
            pl.BlockSpec((L * H, F * W), lambda i: (0, 0)),   # whole table, resident
        ],
        out_specs=pl.BlockSpec((B, F * L), lambda i: (0, 0)),
        compiler_params=pltpu.CompilerParams(
            dimension_semantics=("arbitrary",)),
    )(x_rep, scal_rep, lidx_rep, tab2d)


def reference_forward_np(x, grid_table, scaler):
    """Pure numpy grid_sample (bilinear, zeros, align_corners=False) reference."""
    x = np.asarray(x, np.float32)                    # (B, 2)
    table = np.asarray(grid_table, np.float32)       # (L, F, H, W)
    scaler = np.asarray(scaler, np.float32)          # (L,)
    L, F, H, W = table.shape
    B = x.shape[0]

    out = np.zeros((L, B, F), np.float32)
    for l in range(L):
        gx = x[:, 0] * scaler[l]
        gy = x[:, 1] * scaler[l]
        ix = ((gx + 1.0) * W - 1.0) * 0.5
        iy = ((gy + 1.0) * H - 1.0) * 0.5
        ix0 = np.floor(ix).astype(np.int64)
        iy0 = np.floor(iy).astype(np.int64)
        tx = (ix - ix0).astype(np.float32)
        ty = (iy - iy0).astype(np.float32)
        for dy, wy in ((0, 1.0 - ty), (1, ty)):
            for dx, wx in ((0, 1.0 - tx), (1, tx)):
                xx = ix0 + dx
                yy = iy0 + dy
                valid = ((xx >= 0) & (xx < W) & (yy >= 0) & (yy < H)).astype(np.float32)
                xs = np.clip(xx, 0, W - 1)
                ys = np.clip(yy, 0, H - 1)
                w = wy * wx * valid                                # (B,)
                for f in range(F):
                    out[l, :, f] += w * table[l, f, ys, xs]
    return out.transpose(1, 2, 0).reshape(B, F * L)


if __name__ == "__main__":
    # Small-but-consistent shapes: L=8 levels, F=2 features, base resolution 16,
    # per-level scale 1.26 -> N_max = int(16 * 1.26**7) = 80, batch of 8 points.
    L, F = 8, 2
    N_min, bb = 16, 1.26
    N_max = int(N_min * bb ** (L - 1))               # 80
    B = 8

    key = jax.random.PRNGKey(0)
    k_tab, k_x = jax.random.split(key)

    # Parameter init matching torch.rand(L, F, N_max, N_max) * 2e-4 - 1e-4.
    grid_table = jax.random.uniform(k_tab, (L, F, N_max, N_max), jnp.float32) * 2e-4 - 1e-4
    # scaler = (N_min * bb**arange(L)).to(int64) / 512, matching the torch buffer.
    scaler_np = (np.floor(np.float32(N_min) * np.float32(bb) ** np.arange(L, dtype=np.float32))
                 .astype(np.int64) / 512.0).astype(np.float32)
    scaler = jnp.asarray(scaler_np)
    # Input coordinates in [-1, 1) (grid_sample's normalized coordinate range).
    x = jax.random.uniform(k_x, (B, 2), jnp.float32, minval=-1.0, maxval=1.0)

    y = grid_linear_forward(x, grid_table, scaler)
    y = jax.block_until_ready(y)

    y_ref = reference_forward_np(np.asarray(x), np.asarray(grid_table), scaler_np)
    assert y.shape == (B, F * L), y.shape
    # Error sources: bf16 storage of the table (+ one bf16 round of the final
    # value in the relayout matmul); |table| <= 1e-4 -> total abs err <= ~4e-7.
    # Fractional bilinear weights stay exact f32.
    np.testing.assert_allclose(np.asarray(y), y_ref, rtol=1e-2, atol=2e-6)

    print("KERNEL_OK")
</pallas_src>

<mosaic_0001>
module attributes {stable_mosaic.version = 11 : i64} {
  func.func @_grid_linear_fused_kernel(%arg0: i32, %arg1: memref<64x2xf32, #tpu.memory_space<vmem>>, %arg2: memref<64x1xf32, #tpu.memory_space<vmem>>, %arg3: memref<64x1xi32, #tpu.memory_space<vmem>>, %arg4: memref<640x160xbf16, #tpu.memory_space<vmem>>, %arg5: memref<8x16xf32, #tpu.memory_space<vmem>>) attributes {dimension_semantics = [#tpu.dimension_semantics<arbitrary>], iteration_bounds = array<i64: 1>, scalar_prefetch = 0 : i64, scratch_operands = 0 : i64, tpu.core_type = #tpu.core_type<tc>, window_params = [{pipeline_mode = #tpu.pipeline_mode<synchronous>, transform_indices = @transform_0, window_bounds = array<i64: 64, 2>}, {pipeline_mode = #tpu.pipeline_mode<synchronous>, transform_indices = @transform_1, window_bounds = array<i64: 64, 1>}, {pipeline_mode = #tpu.pipeline_mode<synchronous>, transform_indices = @transform_2, window_bounds = array<i64: 64, 1>}, {pipeline_mode = #tpu.pipeline_mode<synchronous>, transform_indices = @transform_3, window_bounds = array<i64: 640, 160>}, {pipeline_mode = #tpu.pipeline_mode<synchronous>, transform_indices = @transform_4, window_bounds = array<i64: 8, 16>}]} {
    %c0 = arith.constant 0 : index
    %c0_0 = arith.constant 0 : index
    %0 = vector.load %arg1[%c0, %c0_0] : memref<64x2xf32, #tpu.memory_space<vmem>>, vector<64x2xf32>
    %c0_1 = arith.constant 0 : index
    %c0_2 = arith.constant 0 : index
    %1 = vector.load %arg2[%c0_1, %c0_2] : memref<64x1xf32, #tpu.memory_space<vmem>>, vector<64x1xf32>
    %c0_3 = arith.constant 0 : index
    %c0_4 = arith.constant 0 : index
    %2 = vector.load %arg3[%c0_3, %c0_4] : memref<64x1xi32, #tpu.memory_space<vmem>>, vector<64x1xi32>
    %c80_i32 = arith.constant 80 : i32
    %3 = vector.broadcast %c80_i32 : i32 to vector<64x1xi32>
    %4 = arith.muli %2, %3 : vector<64x1xi32>
    %5 = vector.extract_strided_slice %0 {offsets = [0, 0], sizes = [64, 1], strides = [1, 1]} : vector<64x2xf32> to vector<64x1xf32>
    %6 = arith.mulf %5, %1 : vector<64x1xf32>
    %7 = vector.extract_strided_slice %0 {offsets = [0, 1], sizes = [64, 1], strides = [1, 1]} : vector<64x2xf32> to vector<64x1xf32>
    %8 = arith.mulf %7, %1 : vector<64x1xf32>
    %cst = arith.constant 1.000000e+00 : f32
    %9 = vector.broadcast %cst : f32 to vector<64x1xf32>
    %10 = arith.addf %6, %9 : vector<64x1xf32>
    %cst_5 = arith.constant 8.000000e+01 : f32
    %11 = vector.broadcast %cst_5 : f32 to vector<64x1xf32>
    %12 = arith.mulf %10, %11 : vector<64x1xf32>
    %cst_6 = arith.constant 1.000000e+00 : f32
    %13 = vector.broadcast %cst_6 : f32 to vector<64x1xf32>
    %14 = arith.subf %12, %13 : vector<64x1xf32>
    %cst_7 = arith.constant 5.000000e-01 : f32
    %15 = vector.broadcast %cst_7 : f32 to vector<64x1xf32>
    %16 = arith.mulf %14, %15 : vector<64x1xf32>
    %cst_8 = arith.constant 1.000000e+00 : f32
    %17 = vector.broadcast %cst_8 : f32 to vector<64x1xf32>
    %18 = arith.addf %8, %17 : vector<64x1xf32>
    %cst_9 = arith.constant 8.000000e+01 : f32
    %19 = vector.broadcast %cst_9 : f32 to vector<64x1xf32>
    %20 = arith.mulf %18, %19 : vector<64x1xf32>
    %cst_10 = arith.constant 1.000000e+00 : f32
    %21 = vector.broadcast %cst_10 : f32 to vector<64x1xf32>
    %22 = arith.subf %20, %21 : vector<64x1xf32>
    %cst_11 = arith.constant 5.000000e-01 : f32
    %23 = vector.broadcast %cst_11 : f32 to vector<64x1xf32>
    %24 = arith.mulf %22, %23 : vector<64x1xf32>
    %25 = math.floor %16 : vector<64x1xf32>
    %26 = math.floor %24 : vector<64x1xf32>
    %27 = arith.subf %16, %25 : vector<64x1xf32>
    %28 = arith.subf %24, %26 : vector<64x1xf32>
    %29 = arith.fptosi %25 : vector<64x1xf32> to vector<64x1xi32>
    %30 = arith.fptosi %26 : vector<64x1xf32> to vector<64x1xi32>
    %c1_i32 = arith.constant 1 : i32
    %31 = vector.broadcast %c1_i32 : i32 to vector<64x1xi32>
    %32 = arith.addi %30, %31 : vector<64x1xi32>
    %c0_i32 = arith.constant 0 : i32
    %33 = vector.broadcast %c0_i32 : i32 to vector<64x1xi32>
    %34 = arith.cmpi sge, %30, %33 : vector<64x1xi32>
    %c80_i32_12 = arith.constant 80 : i32
    %35 = vector.broadcast %c80_i32_12 : i32 to vector<64x1xi32>
    %36 = arith.cmpi slt, %30, %35 : vector<64x1xi32>
    %37 = arith.andi %34, %36 : vector<64x1xi1>
    %38 = arith.addi %4, %30 : vector<64x1xi32>
    %c-1_i32 = arith.constant -1 : i32
    %39 = vector.broadcast %c-1_i32 : i32 to vector<64x1xi32>
    %40 = arith.select %37, %38, %39 : vector<64x1xi1>, vector<64x1xi32>
    %c0_i32_13 = arith.constant 0 : i32
    %41 = vector.broadcast %c0_i32_13 : i32 to vector<64x1xi32>
    %42 = arith.cmpi sge, %32, %41 : vector<64x1xi32>
    %c80_i32_14 = arith.constant 80 : i32
    %43 = vector.broadcast %c80_i32_14 : i32 to vector<64x1xi32>
    %44 = arith.cmpi slt, %32, %43 : vector<64x1xi32>
    %45 = arith.andi %42, %44 : vector<64x1xi1>
    %46 = arith.addi %4, %32 : vector<64x1xi32>
    %c-1_i32_15 = arith.constant -1 : i32
    %47 = vector.broadcast %c-1_i32_15 : i32 to vector<64x1xi32>
    %48 = arith.select %45, %46, %47 : vector<64x1xi1>, vector<64x1xi32>
    %49 = tpu.concatenate %40, %48 in 0 : vector<64x1xi32>, vector<64x1xi32> -> vector<128x1xi32>
    %50 = tpu.iota {dimensions = array<i32: 1>} : vector<128x640xi32>
    %51 = vector.broadcast %49 : vector<128x1xi32> to vector<128x640xi32>
    %52 = arith.cmpi eq, %50, %51 : vector<128x640xi32>
    %53 = arith.extui %52 : vector<128x640xi1> to vector<128x640xi32>
    %54 = arith.sitofp %53 : vector<128x640xi32> to vector<128x640xf32>
    %55 = arith.truncf %54 : vector<128x640xf32> to vector<128x640xbf16>
    %c0_16 = arith.constant 0 : index
    %c0_17 = arith.constant 0 : index
    %56 = vector.load %arg4[%c0_16, %c0_17] : memref<640x160xbf16, #tpu.memory_space<vmem>>, vector<640x160xbf16>
    %cst_18 = arith.constant dense<0.000000e+00> : vector<128x160xf32>
    %57 = tpu.matmul %55, %56, %cst_18 {dimension_numbers = #tpu.dot_dimension_numbers<[1], [0], [0], [1], [0, 0, 1, 1], [], []>} : vector<128x640xbf16>, vector<640x160xbf16>, vector<128x160xf32> -> vector<128x160xf32>
    %58 = vector.extract_strided_slice %57 {offsets = [0, 0], sizes = [64, 160], strides = [1, 1]} : vector<128x160xf32> to vector<64x160xf32>
    %59 = vector.extract_strided_slice %57 {offsets = [64, 0], sizes = [64, 160], strides = [1, 1]} : vector<128x160xf32> to vector<64x160xf32>
    %cst_19 = arith.constant 1.000000e+00 : f32
    %60 = vector.broadcast %cst_19 : f32 to vector<64x1xf32>
    %61 = arith.subf %60, %28 : vector<64x1xf32>
    %62 = vector.broadcast %61 : vector<64x1xf32> to vector<64x160xf32>
    %63 = arith.mulf %62, %58 : vector<64x160xf32>
    %64 = vector.broadcast %28 : vector<64x1xf32> to vector<64x160xf32>
    %65 = arith.mulf %64, %59 : vector<64x160xf32>
    %66 = arith.addf %63, %65 : vector<64x160xf32>
    %67 = tpu.iota {dimensions = array<i32: 1>} : vector<64x80xi32>
    %68 = vector.broadcast %29 : vector<64x1xi32> to vector<64x80xi32>
    %69 = arith.cmpi eq, %67, %68 : vector<64x80xi32>
    %70 = arith.extui %69 : vector<64x80xi1> to vector<64x80xi32>
    %71 = arith.sitofp %70 : vector<64x80xi32> to vector<64x80xf32>
    %cst_20 = arith.constant 1.000000e+00 : f32
    %72 = vector.broadcast %cst_20 : f32 to vector<64x1xf32>
    %73 = arith.subf %72, %27 : vector<64x1xf32>
    %74 = vector.broadcast %73 : vector<64x1xf32> to vector<64x80xf32>
    %75 = arith.mulf %71, %74 : vector<64x80xf32>
    %c1_i32_21 = arith.constant 1 : i32
    %76 = vector.broadcast %c1_i32_21 : i32 to vector<64x1xi32>
    %77 = arith.addi %29, %76 : vector<64x1xi32>
    %78 = vector.broadcast %77 : vector<64x1xi32> to vector<64x80xi32>
    %79 = arith.cmpi eq, %67, %78 : vector<64x80xi32>
    %80 = arith.extui %79 : vector<64x80xi1> to vector<64x80xi32>
    %81 = arith.sitofp %80 : vector<64x80xi32> to vector<64x80xf32>
    %82 = vector.broadcast %27 : vector<64x1xf32> to vector<64x80xf32>
    %83 = arith.mulf %81, %82 : vector<64x80xf32>
    %84 = arith.addf %75, %83 : vector<64x80xf32>
    %85 = tpu.iota {dimensions = array<i32: 1>} : vector<64x8xi32>
    %86 = vector.broadcast %2 : vector<64x1xi32> to vector<64x8xi32>
    %87 = arith.cmpi eq, %85, %86 : vector<64x8xi32>
    %88 = arith.extui %87 : vector<64x8xi1> to vector<64x8xi32>
    %89 = arith.sitofp %88 : vector<64x8xi32> to vector<64x8xf32>
    %90 = vector.extract_strided_slice %66 {offsets = [0, 0], sizes = [64, 80], strides = [1, 1]} : vector<64x160xf32> to vector<64x80xf32>
    %91 = arith.mulf %90, %84 : vector<64x80xf32>
    %cst_22 = arith.constant dense<0.000000e+00> : vector<64xf32>
    %92 = vector.multi_reduction <add>, %91, %cst_22 [1] : vector<64x80xf32> to vector<64xf32>
    %93 = vector.shape_cast %92 : vector<64xf32> to vector<64x1xf32>
    %94 = vector.broadcast %93 : vector<64x1xf32> to vector<64x8xf32>
    %95 = arith.mulf %94, %89 : vector<64x8xf32>
    %96 = vector.extract_strided_slice %66 {offsets = [0, 80], sizes = [64, 80], strides = [1, 1]} : vector<64x160xf32> to vector<64x80xf32>
    %97 = arith.mulf %96, %84 : vector<64x80xf32>
    %cst_23 = arith.constant dense<0.000000e+00> : vector<64xf32>
    %98 = vector.multi_reduction <add>, %97, %cst_23 [1] : vector<64x80xf32> to vector<64xf32>
    %99 = vector.shape_cast %98 : vector<64xf32> to vector<64x1xf32>
    %100 = vector.broadcast %99 : vector<64x1xf32> to vector<64x8xf32>
    %101 = arith.mulf %100, %89 : vector<64x8xf32>
    %102 = tpu.concatenate %95, %101 in 1 : vector<64x8xf32>, vector<64x8xf32> -> vector<64x16xf32>
    %103 = arith.truncf %102 : vector<64x16xf32> to vector<64x16xbf16>
    %104 = tpu.iota {dimensions = array<i32: 1>} : vector<8x64xi32>
    %105 = tpu.iota {dimensions = array<i32: 0>} : vector<8x64xi32>
    %c8_i32 = arith.constant 8 : i32
    %106 = vector.broadcast %c8_i32 : i32 to vector<8x64xi32>
    %107 = arith.muli %105, %106 : vector<8x64xi32>
    %108 = arith.cmpi sge, %104, %107 : vector<8x64xi32>
    %c8_i32_24 = arith.constant 8 : i32
    %109 = vector.broadcast %c8_i32_24 : i32 to vector<8x64xi32>
    %110 = arith.addi %107, %109 : vector<8x64xi32>
    %111 = arith.cmpi slt, %104, %110 : vector<8x64xi32>
    %112 = arith.andi %108, %111 : vector<8x64xi1>
    %113 = arith.extui %112 : vector<8x64xi1> to vector<8x64xi32>
    %114 = arith.sitofp %113 : vector<8x64xi32> to vector<8x64xf32>
    %115 = arith.truncf %114 : vector<8x64xf32> to vector<8x64xbf16>
    %cst_25 = arith.constant dense<0.000000e+00> : vector<8x16xf32>
    %116 = tpu.matmul %115, %103, %cst_25 {dimension_numbers = #tpu.dot_dimension_numbers<[1], [0], [0], [1], [0, 0, 1, 1], [], []>} : vector<8x64xbf16>, vector<64x16xbf16>, vector<8x16xf32> -> vector<8x16xf32>
    %c0_26 = arith.constant 0 : index
    %c0_27 = arith.constant 0 : index
    %117 = vector.load %arg5[%c0_26, %c0_27] : memref<8x16xf32, #tpu.memory_space<vmem>>, vector<8x16xf32>
    tpu.vector_store %arg5[%c0_26, %c0_27], %116 {strides = array<i32>} : memref<8x16xf32, #tpu.memory_space<vmem>>, vector<8x16xf32>,
    return
  }
  func.func @transform_0(%arg0: i32) -> (i32, i32) {
    %c0_i32 = arith.constant 0 : i32
    %c0_i32_0 = arith.constant 0 : i32
    %c0_i32_1 = arith.constant 0 : i32
    return %c0_i32, %c0_i32_0 : i32, i32
  }
  func.func @transform_1(%arg0: i32) -> (i32, i32) {
    %c0_i32 = arith.constant 0 : i32
    %c0_i32_0 = arith.constant 0 : i32
    %c0_i32_1 = arith.constant 0 : i32
    return %c0_i32, %c0_i32_0 : i32, i32
  }
  func.func @transform_2(%arg0: i32) -> (i32, i32) {
    %c0_i32 = arith.constant 0 : i32
    %c0_i32_0 = arith.constant 0 : i32
    %c0_i32_1 = arith.constant 0 : i32
    return %c0_i32, %c0_i32_0 : i32, i32
  }
  func.func @transform_3(%arg0: i32) -> (i32, i32) {
    %c0_i32 = arith.constant 0 : i32
    %c0_i32_0 = arith.constant 0 : i32
    %c0_i32_1 = arith.constant 0 : i32
    return %c0_i32, %c0_i32_0 : i32, i32
  }
  func.func @transform_4(%arg0: i32) -> (i32, i32) {
    %c0_i32 = arith.constant 0 : i32
    %c0_i32_0 = arith.constant 0 : i32
    %c0_i32_1 = arith.constant 0 : i32
    return %c0_i32, %c0_i32_0 : i32, i32
  }
}

</mosaic_0001>

<llo_original>
// kernel: tpu_custom_call.1
$region0: #{tpu_custom_call.1}
  #allocation0 [shape = 'u32[]', space=smem, size = 0x4, offset = 0x4, fixed_abs, tag = 'smem constant byte address 0x4 - core index']
  #allocation1 [shape = 'u32[72,128]{1,0:T(1,128)}', space=vmem, size = 0x9000, scoped, tag = 'internal scratch']
  %s0 = inlined_call_operand.vmem [shape: f32[64,2], index: 0, kind: input, shape index: {}]
  %s1 = inlined_call_operand.vmem [shape: f32[64,1], index: 1, kind: input, shape index: {}]
  %s2 = inlined_call_operand.vmem [shape: s32[64,1], index: 2, kind: input, shape index: {}]
  %s3 = inlined_call_operand.vmem [shape: bf16[640,160], index: 3, kind: input, shape index: {}]
  %s4 = inlined_call_operand.hbm [shape: f32[8,16], index: 4, kind: output, shape index: {}]
  %s5 = sld [smem:[#allocation0]]
  $region26: #{tpu_custom_call.1} parent=0
    _
  %s7 = ssub.s32 1, %s5
  %s8 = scalar_select 0, %s7, %s5
  $region1: #{tpu_custom_call.1} parent=0
    #allocation2 [shape = 'u8[4096]{0}', space=vmem, size = 0x1000, scoped, tag = 'output window, operand 0, single buffered']
    #allocation3 [shape = 's32[1]{0}', space=sflag, size = 0x4, scoped, tag = 'scoped memory for tpu_custom_call.1']
    %9 = vsyncpa [#allocation3], 0
    // Predicated region
    $region2: #{tpu_custom_call.1} parent=1 // pred_check
      _
    $region3: #{tpu_custom_call.1} parent=1 // pred_check_branch
      %11 = sbr.rel (0) target = $region5
    $region4: #{tpu_custom_call.1} parent=1 // pred_region
      _
    $region5: #{tpu_custom_call.1} parent=1 // pred_fallthru
      _
    // Predicated region
    $region6: #{tpu_custom_call.1} parent=1 // pred_check
      _
    $region7: #{tpu_custom_call.1} parent=1 // pred_check_branch
      %13 = sbr.rel (0) target = $region9
    $region8: #{tpu_custom_call.1} parent=1 // pred_region
      _
    $region9: #{tpu_custom_call.1} parent=1 // pred_fallthru
      _
    // Predicated region
    $region10: #{tpu_custom_call.1} parent=1 // pred_check
      _
    $region11: #{tpu_custom_call.1} parent=1 // pred_check_branch
      %15 = sbr.rel (0) target = $region13
    $region12: #{tpu_custom_call.1} parent=1 // pred_region
      _
    $region13: #{tpu_custom_call.1} parent=1 // pred_fallthru
      _
    // Predicated region
    $region14: #{tpu_custom_call.1} parent=1 // pred_check
      _
    $region15: #{tpu_custom_call.1} parent=1 // pred_check_branch
      %17 = sbr.rel (0) target = $region17
    $region16: #{tpu_custom_call.1} parent=1 // pred_region
      _
    $region17: #{tpu_custom_call.1} parent=1 // pred_fallthru
      _
    %v19 = vld [vmem:[%s0] sm:$0xff]
    %v20 = vld [vmem:[%s0 + $0x8] sm:$0xff]
    %v21 = vld [vmem:[%s0 + $0x10] sm:$0xff]
    %v22 = vld [vmem:[%s0 + $0x18] sm:$0xff]
    %v23 = vld [vmem:[%s0 + $0x20] sm:$0xff]
    %v24 = vld [vmem:[%s0 + $0x28] sm:$0xff]
    %v25 = vld [vmem:[%s0 + $0x30] sm:$0xff]
    %v26 = vld [vmem:[%s0 + $0x38] sm:$0xff]
    %v27 = vld [vmem:[%s1] sm:$0xff]
    %v28 = vld [vmem:[%s1 + $0x8] sm:$0xff]
    %v29 = vld [vmem:[%s1 + $0x10] sm:$0xff]
    %v30 = vld [vmem:[%s1 + $0x18] sm:$0xff]
    %v31 = vld [vmem:[%s1 + $0x20] sm:$0xff]
    %v32 = vld [vmem:[%s1 + $0x28] sm:$0xff]
    %v33 = vld [vmem:[%s1 + $0x30] sm:$0xff]
    %v34 = vld [vmem:[%s1 + $0x38] sm:$0xff]
    %v35 = vld [vmem:[%s2] sm:$0xff]
    %v36 = vld [vmem:[%s2 + $0x8] sm:$0xff]
    %v37 = vld [vmem:[%s2 + $0x10] sm:$0xff]
    %v38 = vld [vmem:[%s2 + $0x18] sm:$0xff]
    %v39 = vld [vmem:[%s2 + $0x20] sm:$0xff]
    %v40 = vld [vmem:[%s2 + $0x28] sm:$0xff]
    %v41 = vld [vmem:[%s2 + $0x30] sm:$0xff]
    %v42 = vld [vmem:[%s2 + $0x38] sm:$0xff]
    %v43 = vmul.u32 %v35, 80
    %v44 = vmul.u32 %v36, 80
    %v45 = vmul.u32 %v37, 80
    %v46 = vmul.u32 %v38, 80
    %v47 = vmul.u32 %v39, 80
    %v48 = vmul.u32 %v40, 80
    %v49 = vmul.u32 %v41, 80
    %v50 = vmul.u32 %v42, 80
    %v51 = vmul.f32 %v19, %v27
    %v52 = vmul.f32 %v20, %v28
    %v53 = vmul.f32 %v21, %v29
    %v54 = vmul.f32 %v22, %v30
    %v55 = vmul.f32 %v23, %v31
    %v56 = vmul.f32 %v24, %v32
    %v57 = vmul.f32 %v25, %v33
    %v58 = vmul.f32 %v26, %v34
    %67 = vrot.lane.b32.xlu0 %v27, 1
    %v68 = vpop.permute.xlu0 %67
    %69 = vrot.lane.b32.xlu0 %v28, 1
    %v70 = vpop.permute.xlu0 %69
    %71 = vrot.lane.b32.xlu0 %v29, 1
    %v72 = vpop.permute.xlu0 %71
    %73 = vrot.lane.b32.xlu0 %v30, 1
    %v74 = vpop.permute.xlu0 %73
    %75 = vrot.lane.b32.xlu0 %v31, 1
    %v76 = vpop.permute.xlu0 %75
    %77 = vrot.lane.b32.xlu0 %v32, 1
    %v78 = vpop.permute.xlu0 %77
    %79 = vrot.lane.b32.xlu0 %v33, 1
    %v80 = vpop.permute.xlu0 %79
    %81 = vrot.lane.b32.xlu0 %v34, 1
    %v82 = vpop.permute.xlu0 %81
    %v91 = vmul.f32 %v19, %v68
    %v92 = vmul.f32 %v20, %v70
    %v93 = vmul.f32 %v21, %v72
    %v94 = vmul.f32 %v22, %v74
    %v95 = vmul.f32 %v23, %v76
    %v96 = vmul.f32 %v24, %v78
    %v97 = vmul.f32 %v25, %v80
    %v98 = vmul.f32 %v26, %v82
    %v99 = vadd.f32 %v51, 1.0
    %v100 = vadd.f32 %v52, 1.0
    %v101 = vadd.f32 %v53, 1.0
    %v102 = vadd.f32 %v54, 1.0
    %v103 = vadd.f32 %v55, 1.0
    %v104 = vadd.f32 %v56, 1.0
    %v105 = vadd.f32 %v57, 1.0
    %v106 = vadd.f32 %v58, 1.0
    %v107 = vmul.f32 %v99, 80.0
    %v108 = vmul.f32 %v100, 80.0
    %v109 = vmul.f32 %v101, 80.0
    %v110 = vmul.f32 %v102, 80.0
    %v111 = vmul.f32 %v103, 80.0
    %v112 = vmul.f32 %v104, 80.0
    %v113 = vmul.f32 %v105, 80.0
    %v114 = vmul.f32 %v106, 80.0
    %v115 = vsub.f32 %v107, 1.0
    %v116 = vsub.f32 %v108, 1.0
    %v117 = vsub.f32 %v109, 1.0
    %v118 = vsub.f32 %v110, 1.0
    %v119 = vsub.f32 %v111, 1.0
    %v120 = vsub.f32 %v112, 1.0
    %v121 = vsub.f32 %v113, 1.0
    %v122 = vsub.f32 %v114, 1.0
    %v123 = vmul.f32 %v115, 0.5
    %v124 = vmul.f32 %v116, 0.5
    %v125 = vmul.f32 %v117, 0.5
    %v126 = vmul.f32 %v118, 0.5
    %v127 = vmul.f32 %v119, 0.5
    %v128 = vmul.f32 %v120, 0.5
    %v129 = vmul.f32 %v121, 0.5
    %v130 = vmul.f32 %v122, 0.5
    %v131 = vadd.f32 %v91, 1.0
    %v132 = vadd.f32 %v92, 1.0
    %v133 = vadd.f32 %v93, 1.0
    %v134 = vadd.f32 %v94, 1.0
    %v135 = vadd.f32 %v95, 1.0
    %v136 = vadd.f32 %v96, 1.0
    %v137 = vadd.f32 %v97, 1.0
    %v138 = vadd.f32 %v98, 1.0
    %v139 = vmul.f32 %v131, 80.0
    %v140 = vmul.f32 %v132, 80.0
    %v141 = vmul.f32 %v133, 80.0
    %v142 = vmul.f32 %v134, 80.0
    %v143 = vmul.f32 %v135, 80.0
    %v144 = vmul.f32 %v136, 80.0
    %v145 = vmul.f32 %v137, 80.0
    %v146 = vmul.f32 %v138, 80.0
    %v147 = vsub.f32 %v139, 1.0
    %v148 = vsub.f32 %v140, 1.0
    %v149 = vsub.f32 %v141, 1.0
    %v150 = vsub.f32 %v142, 1.0
    %v151 = vsub.f32 %v143, 1.0
    %v152 = vsub.f32 %v144, 1.0
    %v153 = vsub.f32 %v145, 1.0
    %v154 = vsub.f32 %v146, 1.0
    %v155 = vmul.f32 %v147, 0.5
    %v156 = vmul.f32 %v148, 0.5
    %v157 = vmul.f32 %v149, 0.5
    %v158 = vmul.f32 %v150, 0.5
    %v159 = vmul.f32 %v151, 0.5
    %v160 = vmul.f32 %v152, 0.5
    %v161 = vmul.f32 %v153, 0.5
    %v162 = vmul.f32 %v154, 0.5
    %v163 = vfloor.f32 %v123
    %v164 = vfloor.f32 %v124
    %v165 = vfloor.f32 %v125
    %v166 = vfloor.f32 %v126
    %v167 = vfloor.f32 %v127
    %v168 = vfloor.f32 %v128
    %v169 = vfloor.f32 %v129
    %v170 = vfloor.f32 %v130
    %v171 = vfloor.f32 %v155
    %v172 = vfloor.f32 %v156
    %v173 = vfloor.f32 %v157
    %v174 = vfloor.f32 %v158
    %v175 = vfloor.f32 %v159
    %v176 = vfloor.f32 %v160
    %v177 = vfloor.f32 %v161
    %v178 = vfloor.f32 %v162
    %v179 = vsub.f32 %v123, %v163
    %v180 = vsub.f32 %v124, %v164
    %v181 = vsub.f32 %v125, %v165
    %v182 = vsub.f32 %v126, %v166
    %v183 = vsub.f32 %v127, %v167
    %v184 = vsub.f32 %v128, %v168
    %v185 = vsub.f32 %v129, %v169
    %v186 = vsub.f32 %v130, %v170
    %v187 = vsub.f32 %v155, %v171
    %v188 = vsub.f32 %v156, %v172
    %v189 = vsub.f32 %v157, %v173
    %v190 = vsub.f32 %v158, %v174
    %v191 = vsub.f32 %v159, %v175
    %v192 = vsub.f32 %v160, %v176
    %v193 = vsub.f32 %v161, %v177
    %v194 = vsub.f32 %v162, %v178
    %v195 = vcvt.f32.s32.to.zero.pseudo %v163
    %v196 = vcvt.f32.s32.to.zero.pseudo %v164
    %v197 = vcvt.f32.s32.to.zero.pseudo %v165
    %v198 = vcvt.f32.s32.to.zero.pseudo %v166
    %v199 = vcvt.f32.s32.to.zero.pseudo %v167
    %v200 = vcvt.f32.s32.to.zero.pseudo %v168
    %v201 = vcvt.f32.s32.to.zero.pseudo %v169
    %v202 = vcvt.f32.s32.to.zero.pseudo %v170
    %v203 = vcvt.f32.s32.to.zero.pseudo %v171
    %v204 = vcvt.f32.s32.to.zero.pseudo %v172
    %v205 = vcvt.f32.s32.to.zero.pseudo %v173
    %v206 = vcvt.f32.s32.to.zero.pseudo %v174
    %v207 = vcvt.f32.s32.to.zero.pseudo %v175
    %v208 = vcvt.f32.s32.to.zero.pseudo %v176
    %v209 = vcvt.f32.s32.to.zero.pseudo %v177
    %v210 = vcvt.f32.s32.to.zero.pseudo %v178
    %v211 = vadd.s32 %v203, 1
    %v212 = vadd.s32 %v204, 1
    %v213 = vadd.s32 %v205, 1
    %v214 = vadd.s32 %v206, 1
    %v215 = vadd.s32 %v207, 1
    %v216 = vadd.s32 %v208, 1
    %v217 = vadd.s32 %v209, 1
    %v218 = vadd.s32 %v210, 1
    %vm219 = vcmp.ge.s32.totalorder %v203, 0
    %vm220 = vcmp.ge.s32.totalorder %v204, 0
    %vm221 = vcmp.ge.s32.totalorder %v205, 0
    %vm222 = vcmp.ge.s32.totalorder %v206, 0
    %vm223 = vcmp.ge.s32.totalorder %v207, 0
    %vm224 = vcmp.ge.s32.totalorder %v208, 0
    %vm225 = vcmp.ge.s32.totalorder %v209, 0
    %vm226 = vcmp.ge.s32.totalorder %v210, 0
    %vm227 = vcmp.lt.s32.totalorder %v203, 80
    %vm228 = vcmp.lt.s32.totalorder %v204, 80
    %vm229 = vcmp.lt.s32.totalorder %v205, 80
    %vm230 = vcmp.lt.s32.totalorder %v206, 80
    %vm231 = vcmp.lt.s32.totalorder %v207, 80
    %vm232 = vcmp.lt.s32.totalorder %v208, 80
    %vm233 = vcmp.lt.s32.totalorder %v209, 80
    %vm234 = vcmp.lt.s32.totalorder %v210, 80
    %vm235 = vmand %vm219, %vm227
    %vm236 = vmand %vm220, %vm228
    %vm237 = vmand %vm221, %vm229
    %vm238 = vmand %vm222, %vm230
    %vm239 = vmand %vm223, %vm231
    %vm240 = vmand %vm224, %vm232
    %vm241 = vmand %vm225, %vm233
    %vm242 = vmand %vm226, %vm234
    %243 = vrot.lane.b32.xlu0 %v203, 127
    %v244 = vpop.permute.xlu0 %243
    %245 = vrot.lane.b32.xlu0 %v204, 127
    %v246 = vpop.permute.xlu0 %245
    %247 = vrot.lane.b32.xlu0 %v205, 127
    %v248 = vpop.permute.xlu0 %247
    %249 = vrot.lane.b32.xlu0 %v206, 127
    %v250 = vpop.permute.xlu0 %249
    %251 = vrot.lane.b32.xlu0 %v207, 127
    %v252 = vpop.permute.xlu0 %251
    %253 = vrot.lane.b32.xlu0 %v208, 127
    %v254 = vpop.permute.xlu0 %253
    %255 = vrot.lane.b32.xlu0 %v209, 127
    %v256 = vpop.permute.xlu0 %255
    %257 = vrot.lane.b32.xlu0 %v210, 127
    %v258 = vpop.permute.xlu0 %257
    %v259 = vadd.s32 %v43, %v244
    %v260 = vadd.s32 %v44, %v246
    %v261 = vadd.s32 %v45, %v248
    %v262 = vadd.s32 %v46, %v250
    %v263 = vadd.s32 %v47, %v252
    %v264 = vadd.s32 %v48, %v254
    %v265 = vadd.s32 %v49, %v256
    %v266 = vadd.s32 %v50, %v258
    %267 = vrot.lane.b32.xlu0 %v259, 1
    %v268 = vpop.permute.xlu0 %267
    %269 = vrot.lane.b32.xlu0 %v260, 1
    %v270 = vpop.permute.xlu0 %269
    %271 = vrot.lane.b32.xlu0 %v261, 1
    %v272 = vpop.permute.xlu0 %271
    %273 = vrot.lane.b32.xlu0 %v262, 1
    %v274 = vpop.permute.xlu0 %273
    %275 = vrot.lane.b32.xlu0 %v263, 1
    %v276 = vpop.permute.xlu0 %275
    %277 = vrot.lane.b32.xlu0 %v264, 1
    %v278 = vpop.permute.xlu0 %277
    %279 = vrot.lane.b32.xlu0 %v265, 1
    %v280 = vpop.permute.xlu0 %279
    %281 = vrot.lane.b32.xlu0 %v266, 1
    %v282 = vpop.permute.xlu0 %281
    %v283 = vsel %vm235, %v268, 4294967295
    %v284 = vsel %vm236, %v270, 4294967295
    %v285 = vsel %vm237, %v272, 4294967295
    %v286 = vsel %vm238, %v274, 4294967295
    %v287 = vsel %vm239, %v276, 4294967295
    %v288 = vsel %vm240, %v278, 4294967295
    %v289 = vsel %vm241, %v280, 4294967295
    %v290 = vsel %vm242, %v282, 4294967295
    %vm291 = vcmp.ge.s32.totalorder %v211, 0
    %vm292 = vcmp.ge.s32.totalorder %v212, 0
    %vm293 = vcmp.ge.s32.totalorder %v213, 0
    %vm294 = vcmp.ge.s32.totalorder %v214, 0
    %vm295 = vcmp.ge.s32.totalorder %v215, 0
    %vm296 = vcmp.ge.s32.totalorder %v216, 0
    %vm297 = vcmp.ge.s32.totalorder %v217, 0
    %vm298 = vcmp.ge.s32.totalorder %v218, 0
    %vm299 = vcmp.lt.s32.totalorder %v211, 80
    %vm300 = vcmp.lt.s32.totalorder %v212, 80
    %vm301 = vcmp.lt.s32.totalorder %v213, 80
    %vm302 = vcmp.lt.s32.totalorder %v214, 80
    %vm303 = vcmp.lt.s32.totalorder %v215, 80
    %vm304 = vcmp.lt.s32.totalorder %v216, 80
    %vm305 = vcmp.lt.s32.totalorder %v217, 80
    %vm306 = vcmp.lt.s32.totalorder %v218, 80
    %vm307 = vmand %vm291, %vm299
    %vm308 = vmand %vm292, %vm300
    %vm309 = vmand %vm293, %vm301
    %vm310 = vmand %vm294, %vm302
    %vm311 = vmand %vm295, %vm303
    %vm312 = vmand %vm296, %vm304
    %vm313 = vmand %vm297, %vm305
    %vm314 = vmand %vm298, %vm306
    %315 = vrot.lane.b32.xlu0 %v211, 127
    %v316 = vpop.permute.xlu0 %315
    %317 = vrot.lane.b32.xlu0 %v212, 127
    %v318 = vpop.permute.xlu0 %317
    %319 = vrot.lane.b32.xlu0 %v213, 127
    %v320 = vpop.permute.xlu0 %319
    %321 = vrot.lane.b32.xlu0 %v214, 127
    %v322 = vpop.permute.xlu0 %321
    %323 = vrot.lane.b32.xlu0 %v215, 127
    %v324 = vpop.permute.xlu0 %323
    %325 = vrot.lane.b32.xlu0 %v216, 127
    %v326 = vpop.permute.xlu0 %325
    %327 = vrot.lane.b32.xlu0 %v217, 127
    %v328 = vpop.permute.xlu0 %327
    %329 = vrot.lane.b32.xlu0 %v218, 127
    %v330 = vpop.permute.xlu0 %329
    %v331 = vadd.s32 %v43, %v316
    %v332 = vadd.s32 %v44, %v318
    %v333 = vadd.s32 %v45, %v320
    %v334 = vadd.s32 %v46, %v322
    %v335 = vadd.s32 %v47, %v324
    %v336 = vadd.s32 %v48, %v326
    %v337 = vadd.s32 %v49, %v328
    %v338 = vadd.s32 %v50, %v330
    %339 = vrot.lane.b32.xlu0 %v331, 1
    %v340 = vpop.permute.xlu0 %339
    %341 = vrot.lane.b32.xlu0 %v332, 1
    %v342 = vpop.permute.xlu0 %341
    %343 = vrot.lane.b32.xlu0 %v333, 1
    %v344 = vpop.permute.xlu0 %343
    %345 = vrot.lane.b32.xlu0 %v334, 1
    %v346 = vpop.permute.xlu0 %345
    %347 = vrot.lane.b32.xlu0 %v335, 1
    %v348 = vpop.permute.xlu0 %347
    %349 = vrot.lane.b32.xlu0 %v336, 1
    %v350 = vpop.permute.xlu0 %349
    %351 = vrot.lane.b32.xlu0 %v337, 1
    %v352 = vpop.permute.xlu0 %351
    %353 = vrot.lane.b32.xlu0 %v338, 1
    %v354 = vpop.permute.xlu0 %353
    %v355 = vsel %vm307, %v340, 4294967295
    %v356 = vsel %vm308, %v342, 4294967295
    %v357 = vsel %vm309, %v344, 4294967295
    %v358 = vsel %vm310, %v346, 4294967295
    %v359 = vsel %vm311, %v348, 4294967295
    %v360 = vsel %vm312, %v350, 4294967295
    %v361 = vsel %vm313, %v352, 4294967295
    %v362 = vsel %vm314, %v354, 4294967295
    %v363 = vlaneseq
    %v364 = vand.u32 %v363, 127
    %v365 = vadd.s32 %v364, 128
    %v366 = vadd.s32 %v364, 256
    %v367 = vadd.s32 %v364, 384
    %v368 = vadd.s32 %v364, 512
    %369 = vset.pattern.permute.xlu0 1
    %370 = vperm.xlu0 %369, %v283
    %v371 = vpop.permute.xlu0 %370
    %372 = vset.pattern.permute.xlu0 1
    %373 = vperm.xlu0 %372, %v284
    %v374 = vpop.permute.xlu0 %373
    %375 = vset.pattern.permute.xlu0 1
    %376 = vperm.xlu0 %375, %v285
    %v377 = vpop.permute.xlu0 %376
    %378 = vset.pattern.permute.xlu0 1
    %379 = vperm.xlu0 %378, %v286
    %v380 = vpop.permute.xlu0 %379
    %381 = vset.pattern.permute.xlu0 1
    %382 = vperm.xlu0 %381, %v287
    %v383 = vpop.permute.xlu0 %382
    %384 = vset.pattern.permute.xlu0 1
    %385 = vperm.xlu0 %384, %v288
    %v386 = vpop.permute.xlu0 %385
    %387 = vset.pattern.permute.xlu0 1
    %388 = vperm.xlu0 %387, %v289
    %v389 = vpop.permute.xlu0 %388
    %390 = vset.pattern.permute.xlu0 1
    %391 = vperm.xlu0 %390, %v290
    %v392 = vpop.permute.xlu0 %391
    %393 = vset.pattern.permute.xlu0 1
    %394 = vperm.xlu0 %393, %v355
    %v395 = vpop.permute.xlu0 %394
    %396 = vset.pattern.permute.xlu0 1
    %397 = vperm.xlu0 %396, %v356
    %v398 = vpop.permute.xlu0 %397
    %399 = vset.pattern.permute.xlu0 1
    %400 = vperm.xlu0 %399, %v357
    %v401 = vpop.permute.xlu0 %400
    %402 = vset.pattern.permute.xlu0 1
    %403 = vperm.xlu0 %402, %v358
    %v404 = vpop.permute.xlu0 %403
    %405 = vset.pattern.permute.xlu0 1
    %406 = vperm.xlu0 %405, %v359
    %v407 = vpop.permute.xlu0 %406
    %408 = vset.pattern.permute.xlu0 1
    %409 = vperm.xlu0 %408, %v360
    %v410 = vpop.permute.xlu0 %409
    %411 = vset.pattern.permute.xlu0 1
    %412 = vperm.xlu0 %411, %v361
    %v413 = vpop.permute.xlu0 %412
    %414 = vset.pattern.permute.xlu0 1
    %415 = vperm.xlu0 %414, %v362
    %v416 = vpop.permute.xlu0 %415
    %vm417 = vcmp.eq.s32.totalorder %v364, %v371
    %vm418 = vcmp.eq.s32.totalorder %v365, %v371
    %vm419 = vcmp.eq.s32.totalorder %v366, %v371
    %vm420 = vcmp.eq.s32.totalorder %v367, %v371
    %vm421 = vcmp.eq.s32.totalorder %v368, %v371
    %vm422 = vcmp.eq.s32.totalorder %v364, %v374
    %vm423 = vcmp.eq.s32.totalorder %v365, %v374
    %vm424 = vcmp.eq.s32.totalorder %v366, %v374
    %vm425 = vcmp.eq.s32.totalorder %v367, %v374
    %vm426 = vcmp.eq.s32.totalorder %v368, %v374
    %vm427 = vcmp.eq.s32.totalorder %v364, %v377
    %vm428 = vcmp.eq.s32.totalorder %v365, %v377
    %vm429 = vcmp.eq.s32.totalorder %v366, %v377
    %vm430 = vcmp.eq.s32.totalorder %v367, %v377
    %vm431 = vcmp.eq.s32.totalorder %v368, %v377
    %vm432 = vcmp.eq.s32.totalorder %v364, %v380
    %vm433 = vcmp.eq.s32.totalorder %v365, %v380
    %vm434 = vcmp.eq.s32.totalorder %v366, %v380
    %vm435 = vcmp.eq.s32.totalorder %v367, %v380
    %vm436 = vcmp.eq.s32.totalorder %v368, %v380
    %vm437 = vcmp.eq.s32.totalorder %v364, %v383
    %vm438 = vcmp.eq.s32.totalorder %v365, %v383
    %vm439 = vcmp.eq.s32.totalorder %v366, %v383
    %vm440 = vcmp.eq.s32.totalorder %v367, %v383
    %vm441 = vcmp.eq.s32.totalorder %v368, %v383
    %vm442 = vcmp.eq.s32.totalorder %v364, %v386
    %vm443 = vcmp.eq.s32.totalorder %v365, %v386
    %vm444 = vcmp.eq.s32.totalorder %v366, %v386
    %vm445 = vcmp.eq.s32.totalorder %v367, %v386
    %vm446 = vcmp.eq.s32.totalorder %v368, %v386
    %vm447 = vcmp.eq.s32.totalorder %v364, %v389
    %vm448 = vcmp.eq.s32.totalorder %v365, %v389
    %vm449 = vcmp.eq.s32.totalorder %v366, %v389
    %vm450 = vcmp.eq.s32.totalorder %v367, %v389
    %vm451 = vcmp.eq.s32.totalorder %v368, %v389
    %vm452 = vcmp.eq.s32.totalorder %v364, %v392
    %vm453 = vcmp.eq.s32.totalorder %v365, %v392
    %vm454 = vcmp.eq.s32.totalorder %v366, %v392
    %vm455 = vcmp.eq.s32.totalorder %v367, %v392
    %vm456 = vcmp.eq.s32.totalorder %v368, %v392
    %vm457 = vcmp.eq.s32.totalorder %v364, %v395
    %vm458 = vcmp.eq.s32.totalorder %v365, %v395
    %vm459 = vcmp.eq.s32.totalorder %v366, %v395
    %vm460 = vcmp.eq.s32.totalorder %v367, %v395
    %vm461 = vcmp.eq.s32.totalorder %v368, %v395
    %vm462 = vcmp.eq.s32.totalorder %v364, %v398
    %vm463 = vcmp.eq.s32.totalorder %v365, %v398
    %vm464 = vcmp.eq.s32.totalorder %v366, %v398
    %vm465 = vcmp.eq.s32.totalorder %v367, %v398
    %vm466 = vcmp.eq.s32.totalorder %v368, %v398
    %vm467 = vcmp.eq.s32.totalorder %v364, %v401
    %vm468 = vcmp.eq.s32.totalorder %v365, %v401
    %vm469 = vcmp.eq.s32.totalorder %v366, %v401
    %vm470 = vcmp.eq.s32.totalorder %v367, %v401
    %vm471 = vcmp.eq.s32.totalorder %v368, %v401
    %vm472 = vcmp.eq.s32.totalorder %v364, %v404
    %vm473 = vcmp.eq.s32.totalorder %v365, %v404
    %vm474 = vcmp.eq.s32.totalorder %v366, %v404
    %vm475 = vcmp.eq.s32.totalorder %v367, %v404
    %vm476 = vcmp.eq.s32.totalorder %v368, %v404
    %vm477 = vcmp.eq.s32.totalorder %v364, %v407
    %vm478 = vcmp.eq.s32.totalorder %v365, %v407
    %vm479 = vcmp.eq.s32.totalorder %v366, %v407
    %vm480 = vcmp.eq.s32.totalorder %v367, %v407
    %vm481 = vcmp.eq.s32.totalorder %v368, %v407
    %vm482 = vcmp.eq.s32.totalorder %v364, %v410
    %vm483 = vcmp.eq.s32.totalorder %v365, %v410
    %vm484 = vcmp.eq.s32.totalorder %v366, %v410
    %vm485 = vcmp.eq.s32.totalorder %v367, %v410
    %vm486 = vcmp.eq.s32.totalorder %v368, %v410
    %vm487 = vcmp.eq.s32.totalorder %v364, %v413
    %vm488 = vcmp.eq.s32.totalorder %v365, %v413
    %vm489 = vcmp.eq.s32.totalorder %v366, %v413
    %vm490 = vcmp.eq.s32.totalorder %v367, %v413
    %vm491 = vcmp.eq.s32.totalorder %v368, %v413
    %vm492 = vcmp.eq.s32.totalorder %v364, %v416
    %vm493 = vcmp.eq.s32.totalorder %v365, %v416
    %vm494 = vcmp.eq.s32.totalorder %v366, %v416
    %vm495 = vcmp.eq.s32.totalorder %v367, %v416
    %vm496 = vcmp.eq.s32.totalorder %v368, %v416
    %v497 = vsel %vm417, 1, 0
    %v498 = vsel %vm418, 1, 0
    %v499 = vsel %vm419, 1, 0
    %v500 = vsel %vm420, 1, 0
    %v501 = vsel %vm421, 1, 0
    %v502 = vsel %vm422, 1, 0
    %v503 = vsel %vm423, 1, 0
    %v504 = vsel %vm424, 1, 0
    %v505 = vsel %vm425, 1, 0
    %v506 = vsel %vm426, 1, 0
    %v507 = vsel %vm427, 1, 0
    %v508 = vsel %vm428, 1, 0
    %v509 = vsel %vm429, 1, 0
    %v510 = vsel %vm430, 1, 0
    %v511 = vsel %vm431, 1, 0
    %v512 = vsel %vm432, 1, 0
    %v513 = vsel %vm433, 1, 0
    %v514 = vsel %vm434, 1, 0
    %v515 = vsel %vm435, 1, 0
    %v516 = vsel %vm436, 1, 0
    %v517 = vsel %vm437, 1, 0
    %v518 = vsel %vm438, 1, 0
    %v519 = vsel %vm439, 1, 0
    %v520 = vsel %vm440, 1, 0
    %v521 = vsel %vm441, 1, 0
    %v522 = vsel %vm442, 1, 0
    %v523 = vsel %vm443, 1, 0
    %v524 = vsel %vm444, 1, 0
    %v525 = vsel %vm445, 1, 0
    %v526 = vsel %vm446, 1, 0
    %v527 = vsel %vm447, 1, 0
    %v528 = vsel %vm448, 1, 0
    %v529 = vsel %vm449, 1, 0
    %v530 = vsel %vm450, 1, 0
    %v531 = vsel %vm451, 1, 0
    %v532 = vsel %vm452, 1, 0
    %v533 = vsel %vm453, 1, 0
    %v534 = vsel %vm454, 1, 0
    %v535 = vsel %vm455, 1, 0
    %v536 = vsel %vm456, 1, 0
    %v537 = vsel %vm457, 1, 0
    %v538 = vsel %vm458, 1, 0
    %v539 = vsel %vm459, 1, 0
    %v540 = vsel %vm460, 1, 0
    %v541 = vsel %vm461, 1, 0
    %v542 = vsel %vm462, 1, 0
    %v543 = vsel %vm463, 1, 0
    %v544 = vsel %vm464, 1, 0
    %v545 = vsel %vm465, 1, 0
    %v546 = vsel %vm466, 1, 0
    %v547 = vsel %vm467, 1, 0
    %v548 = vsel %vm468, 1, 0
    %v549 = vsel %vm469, 1, 0
    %v550 = vsel %vm470, 1, 0
    %v551 = vsel %vm471, 1, 0
    %v552 = vsel %vm472, 1, 0
    %v553 = vsel %vm473, 1, 0
    %v554 = vsel %vm474, 1, 0
    %v555 = vsel %vm475, 1, 0
    %v556 = vsel %vm476, 1, 0
    %v557 = vsel %vm477, 1, 0
    %v558 = vsel %vm478, 1, 0
    %v559 = vsel %vm479, 1, 0
    %v560 = vsel %vm480, 1, 0
    %v561 = vsel %vm481, 1, 0
    %v562 = vsel %vm482, 1, 0
    %v563 = vsel %vm483, 1, 0
    %v564 = vsel %vm484, 1, 0
    %v565 = vsel %vm485, 1, 0
    %v566 = vsel %vm486, 1, 0
    %v567 = vsel %vm487, 1, 0
    %v568 = vsel %vm488, 1, 0
    %v569 = vsel %vm489, 1, 0
    %v570 = vsel %vm490, 1, 0
    %v571 = vsel %vm491, 1, 0
    %v572 = vsel %vm492, 1, 0
    %v573 = vsel %vm493, 1, 0
    %v574 = vsel %vm494, 1, 0
    %v575 = vsel %vm495, 1, 0
    %v576 = vsel %vm496, 1, 0
    %v577 = vcvt.s32.f32 %v497
    %v578 = vcvt.s32.f32 %v498
    %v579 = vcvt.s32.f32 %v499
    %v580 = vcvt.s32.f32 %v500
    %v581 = vcvt.s32.f32 %v501
    %v582 = vcvt.s32.f32 %v502
    %v583 = vcvt.s32.f32 %v503
    %v584 = vcvt.s32.f32 %v504
    %v585 = vcvt.s32.f32 %v505
    %v586 = vcvt.s32.f32 %v506
    %v587 = vcvt.s32.f32 %v507
    %v588 = vcvt.s32.f32 %v508
    %v589 = vcvt.s32.f32 %v509
    %v590 = vcvt.s32.f32 %v510
    %v591 = vcvt.s32.f32 %v511
    %v592 = vcvt.s32.f32 %v512
    %v593 = vcvt.s32.f32 %v513
    %v594 = vcvt.s32.f32 %v514
    %v595 = vcvt.s32.f32 %v515
    %v596 = vcvt.s32.f32 %v516
    %v597 = vcvt.s32.f32 %v517
    %v598 = vcvt.s32.f32 %v518
    %v599 = vcvt.s32.f32 %v519
    %v600 = vcvt.s32.f32 %v520
    %v601 = vcvt.s32.f32 %v521
    %v602 = vcvt.s32.f32 %v522
    %v603 = vcvt.s32.f32 %v523
    %v604 = vcvt.s32.f32 %v524
    %v605 = vcvt.s32.f32 %v525
    %v606 = vcvt.s32.f32 %v526
    %v607 = vcvt.s32.f32 %v527
    %v608 = vcvt.s32.f32 %v528
    %v609 = vcvt.s32.f32 %v529
    %v610 = vcvt.s32.f32 %v530
    %v611 = vcvt.s32.f32 %v531
    %v612 = vcvt.s32.f32 %v532
    %v613 = vcvt.s32.f32 %v533
    %v614 = vcvt.s32.f32 %v534
    %v615 = vcvt.s32.f32 %v535
    %v616 = vcvt.s32.f32 %v536
    %v617 = vcvt.s32.f32 %v537
    %v618 = vcvt.s32.f32 %v538
    %v619 = vcvt.s32.f32 %v539
    %v620 = vcvt.s32.f32 %v540
    %v621 = vcvt.s32.f32 %v541
    %v622 = vcvt.s32.f32 %v542
    %v623 = vcvt.s32.f32 %v543
    %v624 = vcvt.s32.f32 %v544
    %v625 = vcvt.s32.f32 %v545
    %v626 = vcvt.s32.f32 %v546
    %v627 = vcvt.s32.f32 %v547
    %v628 = vcvt.s32.f32 %v548
    %v629 = vcvt.s32.f32 %v549
    %v630 = vcvt.s32.f32 %v550
    %v631 = vcvt.s32.f32 %v551
    %v632 = vcvt.s32.f32 %v552
    %v633 = vcvt.s32.f32 %v553
    %v634 = vcvt.s32.f32 %v554
    %v635 = vcvt.s32.f32 %v555
    %v636 = vcvt.s32.f32 %v556
    %v637 = vcvt.s32.f32 %v557
    %v638 = vcvt.s32.f32 %v558
    %v639 = vcvt.s32.f32 %v559
    %v640 = vcvt.s32.f32 %v560
    %v641 = vcvt.s32.f32 %v561
    %v642 = vcvt.s32.f32 %v562
    %v643 = vcvt.s32.f32 %v563
    %v644 = vcvt.s32.f32 %v564
    %v645 = vcvt.s32.f32 %v565
    %v646 = vcvt.s32.f32 %v566
    %v647 = vcvt.s32.f32 %v567
    %v648 = vcvt.s32.f32 %v568
    %v649 = vcvt.s32.f32 %v569
    %v650 = vcvt.s32.f32 %v570
    %v651 = vcvt.s32.f32 %v571
    %v652 = vcvt.s32.f32 %v572
    %v653 = vcvt.s32.f32 %v573
    %v654 = vcvt.s32.f32 %v574
    %v655 = vcvt.s32.f32 %v575
    %v656 = vcvt.s32.f32 %v576
    %v657 = vpack.c.bf16 %v582, %v577
    %v658 = vpack.c.bf16 %v583, %v578
    %v659 = vpack.c.bf16 %v584, %v579
    %v660 = vpack.c.bf16 %v585, %v580
    %v661 = vpack.c.bf16 %v586, %v581
    %v662 = vpack.c.bf16 %v592, %v587
    %v663 = vpack.c.bf16 %v593, %v588
    %v664 = vpack.c.bf16 %v594, %v589
    %v665 = vpack.c.bf16 %v595, %v590
    %v666 = vpack.c.bf16 %v596, %v591
    %v667 = vpack.c.bf16 %v602, %v597
    %v668 = vpack.c.bf16 %v603, %v598
    %v669 = vpack.c.bf16 %v604, %v599
    %v670 = vpack.c.bf16 %v605, %v600
    %v671 = vpack.c.bf16 %v606, %v601
    %v672 = vpack.c.bf16 %v612, %v607
    %v673 = vpack.c.bf16 %v613, %v608
    %v674 = vpack.c.bf16 %v614, %v609
    %v675 = vpack.c.bf16 %v615, %v610
    %v676 = vpack.c.bf16 %v616, %v611
    %v677 = vpack.c.bf16 %v622, %v617
    %v678 = vpack.c.bf16 %v623, %v618
    %v679 = vpack.c.bf16 %v624, %v619
    %v680 = vpack.c.bf16 %v625, %v620
    %v681 = vpack.c.bf16 %v626, %v621
    %v682 = vpack.c.bf16 %v632, %v627
    %v683 = vpack.c.bf16 %v633, %v628
    %v684 = vpack.c.bf16 %v634, %v629
    %v685 = vpack.c.bf16 %v635, %v630
    %v686 = vpack.c.bf16 %v636, %v631
    %v687 = vpack.c.bf16 %v642, %v637
    %v688 = vpack.c.bf16 %v643, %v638
    %v689 = vpack.c.bf16 %v644, %v639
    %v690 = vpack.c.bf16 %v645, %v640
    %v691 = vpack.c.bf16 %v646, %v641
    %v692 = vpack.c.bf16 %v652, %v647
    %v693 = vpack.c.bf16 %v653, %v648
    %v694 = vpack.c.bf16 %v654, %v649
    %v695 = vpack.c.bf16 %v655, %v650
    %v696 = vpack.c.bf16 %v656, %v651
    %v697 = vld [vmem:[%s3] sm:$0xff]
    %v698 = vld [vmem:[%s3 + $0x8] sm:$0xff]
    %v699 = vld [vmem:[%s3 + $0x10] sm:$0xff]
    %v700 = vld [vmem:[%s3 + $0x18] sm:$0xff]
    %v701 = vld [vmem:[%s3 + $0x20] sm:$0xff]
    %v702 = vld [vmem:[%s3 + $0x28] sm:$0xff]
    %v703 = vld [vmem:[%s3 + $0x30] sm:$0xff]
    %v704 = vld [vmem:[%s3 + $0x38] sm:$0xff]
    %v705 = vld [vmem:[%s3 + $0x40] sm:$0xff]
    %v706 = vld [vmem:[%s3 + $0x48] sm:$0xff]
    %v707 = vld [vmem:[%s3 + $0x50] sm:$0xff]
    %v708 = vld [vmem:[%s3 + $0x58] sm:$0xff]
    %v709 = vld [vmem:[%s3 + $0x60] sm:$0xff]
    %v710 = vld [vmem:[%s3 + $0x68] sm:$0xff]
    %v711 = vld [vmem:[%s3 + $0x70] sm:$0xff]
    %v712 = vld [vmem:[%s3 + $0x78] sm:$0xff]
    %v713 = vld [vmem:[%s3 + $0x80] sm:$0xff]
    %v714 = vld [vmem:[%s3 + $0x88] sm:$0xff]
    %v715 = vld [vmem:[%s3 + $0x90] sm:$0xff]
    %v716 = vld [vmem:[%s3 + $0x98] sm:$0xff]
    %v717 = vld [vmem:[%s3 + $0xa0] sm:$0xff]
    %v718 = vld [vmem:[%s3 + $0xa8] sm:$0xff]
    %v719 = vld [vmem:[%s3 + $0xb0] sm:$0xff]
    %v720 = vld [vmem:[%s3 + $0xb8] sm:$0xff]
    %v721 = vld [vmem:[%s3 + $0xc0] sm:$0xff]
    %v722 = vld [vmem:[%s3 + $0xc8] sm:$0xff]
    %v723 = vld [vmem:[%s3 + $0xd0] sm:$0xff]
    %v724 = vld [vmem:[%s3 + $0xd8] sm:$0xff]
    %v725 = vld [vmem:[%s3 + $0xe0] sm:$0xff]
    %v726 = vld [vmem:[%s3 + $0xe8] sm:$0xff]
    %v727 = vld [vmem:[%s3 + $0xf0] sm:$0xff]
    %v728 = vld [vmem:[%s3 + $0xf8] sm:$0xff]
    %v729 = vld [vmem:[%s3 + $0x100] sm:$0xff]
    %v730 = vld [vmem:[%s3 + $0x108] sm:$0xff]
    %v731 = vld [vmem:[%s3 + $0x110] sm:$0xff]
    %v732 = vld [vmem:[%s3 + $0x118] sm:$0xff]
    %v733 = vld [vmem:[%s3 + $0x120] sm:$0xff]
    %v734 = vld [vmem:[%s3 + $0x128] sm:$0xff]
    %v735 = vld [vmem:[%s3 + $0x130] sm:$0xff]
    %v736 = vld [vmem:[%s3 + $0x138] sm:$0xff]
    %v737 = vld [vmem:[%s3 + $0x140] sm:$0xff]
    %v738 = vld [vmem:[%s3 + $0x148] sm:$0xff]
    %v739 = vld [vmem:[%s3 + $0x150] sm:$0xff]
    %v740 = vld [vmem:[%s3 + $0x158] sm:$0xff]
    %v741 = vld [vmem:[%s3 + $0x160] sm:$0xff]
    %v742 = vld [vmem:[%s3 + $0x168] sm:$0xff]
    %v743 = vld [vmem:[%s3 + $0x170] sm:$0xff]
    %v744 = vld [vmem:[%s3 + $0x178] sm:$0xff]
    %v745 = vld [vmem:[%s3 + $0x180] sm:$0xff]
    %v746 = vld [vmem:[%s3 + $0x188] sm:$0xff]
    %v747 = vld [vmem:[%s3 + $0x190] sm:$0xff]
    %v748 = vld [vmem:[%s3 + $0x198] sm:$0xff]
    %v749 = vld [vmem:[%s3 + $0x1a0] sm:$0xff]
    %v750 = vld [vmem:[%s3 + $0x1a8] sm:$0xff]
    %v751 = vld [vmem:[%s3 + $0x1b0] sm:$0xff]
    %v752 = vld [vmem:[%s3 + $0x1b8] sm:$0xff]
    %v753 = vld [vmem:[%s3 + $0x1c0] sm:$0xff]
    %v754 = vld [vmem:[%s3 + $0x1c8] sm:$0xff]
    %v755 = vld [vmem:[%s3 + $0x1d0] sm:$0xff]
    %v756 = vld [vmem:[%s3 + $0x1d8] sm:$0xff]
    %v757 = vld [vmem:[%s3 + $0x1e0] sm:$0xff]
    %v758 = vld [vmem:[%s3 + $0x1e8] sm:$0xff]
    %v759 = vld [vmem:[%s3 + $0x1f0] sm:$0xff]
    %v760 = vld [vmem:[%s3 + $0x1f8] sm:$0xff]
    %v761 = vld [vmem:[%s3 + $0x200] sm:$0xff]
    %v762 = vld [vmem:[%s3 + $0x208] sm:$0xff]
    %v763 = vld [vmem:[%s3 + $0x210] sm:$0xff]
    %v764 = vld [vmem:[%s3 + $0x218] sm:$0xff]
    %v765 = vld [vmem:[%s3 + $0x220] sm:$0xff]
    %v766 = vld [vmem:[%s3 + $0x228] sm:$0xff]
    %v767 = vld [vmem:[%s3 + $0x230] sm:$0xff]
    %v768 = vld [vmem:[%s3 + $0x238] sm:$0xff]
    %v769 = vld [vmem:[%s3 + $0x240] sm:$0xff]
    %v770 = vld [vmem:[%s3 + $0x248] sm:$0xff]
    %v771 = vld [vmem:[%s3 + $0x250] sm:$0xff]
    %v772 = vld [vmem:[%s3 + $0x258] sm:$0xff]
    %v773 = vld [vmem:[%s3 + $0x260] sm:$0xff]
    %v774 = vld [vmem:[%s3 + $0x268] sm:$0xff]
    %v775 = vld [vmem:[%s3 + $0x270] sm:$0xff]
    %v776 = vld [vmem:[%s3 + $0x278] sm:$0xff]
    %v857 = vunpack.c.l.b16 %v697
    %v858 = vunpack.c.h.b16 %v697
    %v859 = vunpack.c.l.b16 %v698
    %v860 = vunpack.c.h.b16 %v698
    %v861 = vunpack.c.l.b16 %v699
    %v862 = vunpack.c.h.b16 %v699
    %v863 = vunpack.c.l.b16 %v700
    %v864 = vunpack.c.h.b16 %v700
    %v865 = vunpack.c.l.b16 %v701
    %v866 = vunpack.c.h.b16 %v701
    %v867 = vunpack.c.l.b16 %v702
    %v868 = vunpack.c.h.b16 %v702
    %v869 = vunpack.c.l.b16 %v703
    %v870 = vunpack.c.h.b16 %v703
    %v871 = vunpack.c.l.b16 %v704
    %v872 = vunpack.c.h.b16 %v704
    %v873 = vunpack.c.l.b16 %v705
    %v874 = vunpack.c.h.b16 %v705
    %v875 = vunpack.c.l.b16 %v706
    %v876 = vunpack.c.h.b16 %v706
    %v877 = vunpack.c.l.b16 %v707
    %v878 = vunpack.c.h.b16 %v707
    %v879 = vunpack.c.l.b16 %v708
    %v880 = vunpack.c.h.b16 %v708
    %v881 = vunpack.c.l.b16 %v709
    %v882 = vunpack.c.h.b16 %v709
    %v883 = vunpack.c.l.b16 %v710
    %v884 = vunpack.c.h.b16 %v710
    %v885 = vunpack.c.l.b16 %v711
    %v886 = vunpack.c.h.b16 %v711
    %v887 = vunpack.c.l.b16 %v712
    %v888 = vunpack.c.h.b16 %v712
    %v889 = vunpack.c.l.b16 %v713
    %v890 = vunpack.c.h.b16 %v713
    %v891 = vunpack.c.l.b16 %v714
    %v892 = vunpack.c.h.b16 %v714
    %v893 = vunpack.c.l.b16 %v715
    %v894 = vunpack.c.h.b16 %v715
    %v895 = vunpack.c.l.b16 %v716
    %v896 = vunpack.c.h.b16 %v716
    %v897 = vunpack.c.l.b16 %v717
    %v898 = vunpack.c.h.b16 %v717
    %v899 = vunpack.c.l.b16 %v718
    %v900 = vunpack.c.h.b16 %v718
    %v901 = vunpack.c.l.b16 %v719
    %v902 = vunpack.c.h.b16 %v719
    %v903 = vunpack.c.l.b16 %v720
    %v904 = vunpack.c.h.b16 %v720
    %v905 = vunpack.c.l.b16 %v721
    %v906 = vunpack.c.h.b16 %v721
    %v907 = vunpack.c.l.b16 %v722
    %v908 = vunpack.c.h.b16 %v722
    %v909 = vunpack.c.l.b16 %v723
    %v910 = vunpack.c.h.b16 %v723
    %v911 = vunpack.c.l.b16 %v724
    %v912 = vunpack.c.h.b16 %v724
    %v913 = vunpack.c.l.b16 %v725
    %v914 = vunpack.c.h.b16 %v725
    %v915 = vunpack.c.l.b16 %v726
    %v916 = vunpack.c.h.b16 %v726
    %v917 = vunpack.c.l.b16 %v727
    %v918 = vunpack.c.h.b16 %v727
    %v919 = vunpack.c.l.b16 %v728
    %v920 = vunpack.c.h.b16 %v728
    %v921 = vunpack.c.l.b16 %v729
    %v922 = vunpack.c.h.b16 %v729
    %v923 = vunpack.c.l.b16 %v730
    %v924 = vunpack.c.h.b16 %v730
    %v925 = vunpack.c.l.b16 %v731
    %v926 = vunpack.c.h.b16 %v731
    %v927 = vunpack.c.l.b16 %v732
    %v928 = vunpack.c.h.b16 %v732
    %v929 = vunpack.c.l.b16 %v733
    %v930 = vunpack.c.h.b16 %v733
    %v931 = vunpack.c.l.b16 %v734
    %v932 = vunpack.c.h.b16 %v734
    %v933 = vunpack.c.l.b16 %v735
    %v934 = vunpack.c.h.b16 %v735
    %v935 = vunpack.c.l.b16 %v736
    %v936 = vunpack.c.h.b16 %v736
    %v937 = vunpack.c.l.b16 %v737
    %v938 = vunpack.c.h.b16 %v737
    %v939 = vunpack.c.l.b16 %v738
    %v940 = vunpack.c.h.b16 %v738
    %v941 = vunpack.c.l.b16 %v739
    %v942 = vunpack.c.h.b16 %v739
    %v943 = vunpack.c.l.b16 %v740
    %v944 = vunpack.c.h.b16 %v740
    %v945 = vunpack.c.l.b16 %v741
    %v946 = vunpack.c.h.b16 %v741
    %v947 = vunpack.c.l.b16 %v742
    %v948 = vunpack.c.h.b16 %v742
    %v949 = vunpack.c.l.b16 %v743
    %v950 = vunpack.c.h.b16 %v743
    %v951 = vunpack.c.l.b16 %v744
    %v952 = vunpack.c.h.b16 %v744
    %v953 = vunpack.c.l.b16 %v745
    %v954 = vunpack.c.h.b16 %v745
    %v955 = vunpack.c.l.b16 %v746
    %v956 = vunpack.c.h.b16 %v746
    %v957 = vunpack.c.l.b16 %v747
    %v958 = vunpack.c.h.b16 %v747
    %v959 = vunpack.c.l.b16 %v748
    %v960 = vunpack.c.h.b16 %v748
    %v961 = vunpack.c.l.b16 %v749
    %v962 = vunpack.c.h.b16 %v749
    %v963 = vunpack.c.l.b16 %v750
    %v964 = vunpack.c.h.b16 %v750
    %v965 = vunpack.c.l.b16 %v751
    %v966 = vunpack.c.h.b16 %v751
    %v967 = vunpack.c.l.b16 %v752
    %v968 = vunpack.c.h.b16 %v752
    %v969 = vunpack.c.l.b16 %v753
    %v970 = vunpack.c.h.b16 %v753
    %v971 = vunpack.c.l.b16 %v754
    %v972 = vunpack.c.h.b16 %v754
    %v973 = vunpack.c.l.b16 %v755
    %v974 = vunpack.c.h.b16 %v755
    %v975 = vunpack.c.l.b16 %v756
    %v976 = vunpack.c.h.b16 %v756
    %v977 = vunpack.c.l.b16 %v757
    %v978 = vunpack.c.h.b16 %v757
    %v979 = vunpack.c.l.b16 %v758
    %v980 = vunpack.c.h.b16 %v758
    %v981 = vunpack.c.l.b16 %v759
    %v982 = vunpack.c.h.b16 %v759
    %v983 = vunpack.c.l.b16 %v760
    %v984 = vunpack.c.h.b16 %v760
    %v985 = vunpack.c.l.b16 %v761
    %v986 = vunpack.c.h.b16 %v761
    %v987 = vunpack.c.l.b16 %v762
    %v988 = vunpack.c.h.b16 %v762
    %v989 = vunpack.c.l.b16 %v763
    %v990 = vunpack.c.h.b16 %v763
    %v991 = vunpack.c.l.b16 %v764
    %v992 = vunpack.c.h.b16 %v764
    %v993 = vunpack.c.l.b16 %v765
    %v994 = vunpack.c.h.b16 %v765
    %v995 = vunpack.c.l.b16 %v766
    %v996 = vunpack.c.h.b16 %v766
    %v997 = vunpack.c.l.b16 %v767
    %v998 = vunpack.c.h.b16 %v767
    %v999 = vunpack.c.l.b16 %v768
    %v1000 = vunpack.c.h.b16 %v768
    %v1001 = vunpack.c.l.b16 %v769
    %v1002 = vunpack.c.h.b16 %v769
    %v1003 = vunpack.c.l.b16 %v770
    %v1004 = vunpack.c.h.b16 %v770
    %v1005 = vunpack.c.l.b16 %v771
    %v1006 = vunpack.c.h.b16 %v771
    %v1007 = vunpack.c.l.b16 %v772
    %v1008 = vunpack.c.h.b16 %v772
    %v1009 = vunpack.c.l.b16 %v773
    %v1010 = vunpack.c.h.b16 %v773
    %v1011 = vunpack.c.l.b16 %v774
    %v1012 = vunpack.c.h.b16 %v774
    %v1013 = vunpack.c.l.b16 %v775
    %v1014 = vunpack.c.h.b16 %v775
    %v1015 = vunpack.c.l.b16 %v776
    %v1016 = vunpack.c.h.b16 %v776
    %v1017 = vpack.c.b16 %v859, %v857
    %v1018 = vpack.c.b16 %v860, %v858
    %v1019 = vpack.c.b16 %v863, %v861
    %v1020 = vpack.c.b16 %v864, %v862
    %v1021 = vpack.c.b16 %v867, %v865
    %v1022 = vpack.c.b16 %v868, %v866
    %v1023 = vpack.c.b16 %v871, %v869
    %v1024 = vpack.c.b16 %v872, %v870
    %v1025 = vpack.c.b16 %v875, %v873
    %v1026 = vpack.c.b16 %v876, %v874
    %v1027 = vpack.c.b16 %v879, %v877
    %v1028 = vpack.c.b16 %v880, %v878
    %v1029 = vpack.c.b16 %v883, %v881
    %v1030 = vpack.c.b16 %v884, %v882
    %v1031 = vpack.c.b16 %v887, %v885
    %v1032 = vpack.c.b16 %v888, %v886
    %v1033 = vpack.c.b16 %v891, %v889
    %v1034 = vpack.c.b16 %v892, %v890
    %v1035 = vpack.c.b16 %v895, %v893
    %v1036 = vpack.c.b16 %v896, %v894
    %v1037 = vpack.c.b16 %v899, %v897
    %v1038 = vpack.c.b16 %v900, %v898
    %v1039 = vpack.c.b16 %v903, %v901
    %v1040 = vpack.c.b16 %v904, %v902
    %v1041 = vpack.c.b16 %v907, %v905
    %v1042 = vpack.c.b16 %v908, %v906
    %v1043 = vpack.c.b16 %v911, %v909
    %v1044 = vpack.c.b16 %v912, %v910
    %v1045 = vpack.c.b16 %v915, %v913
    %v1046 = vpack.c.b16 %v916, %v914
    %v1047 = vpack.c.b16 %v919, %v917
    %v1048 = vpack.c.b16 %v920, %v918
    %v1049 = vpack.c.b16 %v923, %v921
    %v1050 = vpack.c.b16 %v924, %v922
    %v1051 = vpack.c.b16 %v927, %v925
    %v1052 = vpack.c.b16 %v928, %v926
    %v1053 = vpack.c.b16 %v931, %v929
    %v1054 = vpack.c.b16 %v932, %v930
    %v1055 = vpack.c.b16 %v935, %v933
    %v1056 = vpack.c.b16 %v936, %v934
    %v1057 = vpack.c.b16 %v939, %v937
    %v1058 = vpack.c.b16 %v940, %v938
    %v1059 = vpack.c.b16 %v943, %v941
    %v1060 = vpack.c.b16 %v944, %v942
    %v1061 = vpack.c.b16 %v947, %v945
    %v1062 = vpack.c.b16 %v948, %v946
    %v1063 = vpack.c.b16 %v951, %v949
    %v1064 = vpack.c.b16 %v952, %v950
    %v1065 = vpack.c.b16 %v955, %v953
    %v1066 = vpack.c.b16 %v956, %v954
    %v1067 = vpack.c.b16 %v959, %v957
    %v1068 = vpack.c.b16 %v960, %v958
    %v1069 = vpack.c.b16 %v963, %v961
    %v1070 = vpack.c.b16 %v964, %v962
    %v1071 = vpack.c.b16 %v967, %v965
    %v1072 = vpack.c.b16 %v968, %v966
    %v1073 = vpack.c.b16 %v971, %v969
    %v1074 = vpack.c.b16 %v972, %v970
    %v1075 = vpack.c.b16 %v975, %v973
    %v1076 = vpack.c.b16 %v976, %v974
    %v1077 = vpack.c.b16 %v979, %v977
    %v1078 = vpack.c.b16 %v980, %v978
    %v1079 = vpack.c.b16 %v983, %v981
    %v1080 = vpack.c.b16 %v984, %v982
    %v1081 = vpack.c.b16 %v987, %v985
    %v1082 = vpack.c.b16 %v988, %v986
    %v1083 = vpack.c.b16 %v991, %v989
    %v1084 = vpack.c.b16 %v992, %v990
    %v1085 = vpack.c.b16 %v995, %v993
    %v1086 = vpack.c.b16 %v996, %v994
    %v1087 = vpack.c.b16 %v999, %v997
    %v1088 = vpack.c.b16 %v1000, %v998
    %v1089 = vpack.c.b16 %v1003, %v1001
    %v1090 = vpack.c.b16 %v1004, %v1002
    %v1091 = vpack.c.b16 %v1007, %v1005
    %v1092 = vpack.c.b16 %v1008, %v1006
    %v1093 = vpack.c.b16 %v1011, %v1009
    %v1094 = vpack.c.b16 %v1012, %v1010
    %v1095 = vpack.c.b16 %v1015, %v1013
    %v1096 = vpack.c.b16 %v1016, %v1014
    %1177 = vmatpush.bf16.msra.mxu0 %v1031
    %1178 = vmatpush.bf16.msra.mxu0 %v1029
    %1179 = vmatpush.bf16.msra.mxu0 %v1027
    %1180 = vmatpush.bf16.msra.mxu0 %v1025
    %1181 = vmatpush.bf16.msra.mxu0 %v1023
    %1182 = vmatpush.bf16.msra.mxu0 %v1021
    %1183 = vmatpush.bf16.msra.mxu0 %v1019
    %1184 = vmatpush.bf16.msra.mxu0 %v1017
    %1185 = vmatmul.bf16.gmra.mxu0 %v657
    %v1186 = vpop.f32.mrf.mxu0
    %v1187 = vadd.f32 0.0, %v1186
    %v1188 = vpop.f32.mrf.mxu0
    %v1189 = vadd.f32 0.0, %v1188
    %1190 = vmatmul.bf16.gmra.mxu0 %v662
    %v1191 = vpop.f32.mrf.mxu0
    %v1192 = vadd.f32 0.0, %v1191
    %v1193 = vpop.f32.mrf.mxu0
    %v1194 = vadd.f32 0.0, %v1193
    %1195 = vmatmul.bf16.gmra.mxu0 %v667
    %v1196 = vpop.f32.mrf.mxu0
    %v1197 = vadd.f32 0.0, %v1196
    %v1198 = vpop.f32.mrf.mxu0
    %v1199 = vadd.f32 0.0, %v1198
    %1200 = vmatmul.bf16.gmra.mxu0 %v672
    %v1201 = vpop.f32.mrf.mxu0
    %v1202 = vadd.f32 0.0, %v1201
    %v1203 = vpop.f32.mrf.mxu0
    %v1204 = vadd.f32 0.0, %v1203
    %1205 = vmatmul.bf16.gmra.mxu0 %v677
    %v1206 = vpop.f32.mrf.mxu0
    %v1207 = vadd.f32 0.0, %v1206
    %v1208 = vpop.f32.mrf.mxu0
    %v1209 = vadd.f32 0.0, %v1208
    %1210 = vmatmul.bf16.gmra.mxu0 %v682
    %v1211 = vpop.f32.mrf.mxu0
    %v1212 = vadd.f32 0.0, %v1211
    %v1213 = vpop.f32.mrf.mxu0
    %v1214 = vadd.f32 0.0, %v1213
    %1215 = vmatmul.bf16.gmra.mxu0 %v687
    %v1216 = vpop.f32.mrf.mxu0
    %v1217 = vadd.f32 0.0, %v1216
    %v1218 = vpop.f32.mrf.mxu0
    %v1219 = vadd.f32 0.0, %v1218
    %1220 = vmatmul.bf16.gmra.mxu0 %v692
    %v1221 = vpop.f32.mrf.mxu0
    %v1222 = vadd.f32 0.0, %v1221
    %v1223 = vpop.f32.mrf.mxu0
    %v1224 = vadd.f32 0.0, %v1223
    %1225 = vdwg.mxu0
    %1226 = vmatpush.bf16.msra.mxu0 %v1047
    %1227 = vmatpush.bf16.msra.mxu0 %v1045
    %1228 = vmatpush.bf16.msra.mxu0 %v1043
    %1229 = vmatpush.bf16.msra.mxu0 %v1041
    %1230 = vmatpush.bf16.msra.mxu0 %v1039
    %1231 = vmatpush.bf16.msra.mxu0 %v1037
    %1232 = vmatpush.bf16.msra.mxu0 %v1035
    %1233 = vmatpush.bf16.msra.mxu0 %v1033
    %1234 = vmatmul.bf16.gmra.mxu0 %v658
    %v1235 = vpop.f32.mrf.mxu0
    %v1236 = vadd.f32 %v1187, %v1235
    %v1237 = vpop.f32.mrf.mxu0
    %v1238 = vadd.f32 %v1189, %v1237
    %1239 = vmatmul.bf16.gmra.mxu0 %v663
    %v1240 = vpop.f32.mrf.mxu0
    %v1241 = vadd.f32 %v1192, %v1240
    %v1242 = vpop.f32.mrf.mxu0
    %v1243 = vadd.f32 %v1194, %v1242
    %1244 = vmatmul.bf16.gmra.mxu0 %v668
    %v1245 = vpop.f32.mrf.mxu0
    %v1246 = vadd.f32 %v1197, %v1245
    %v1247 = vpop.f32.mrf.mxu0
    %v1248 = vadd.f32 %v1199, %v1247
    %1249 = vmatmul.bf16.gmra.mxu0 %v673
    %v1250 = vpop.f32.mrf.mxu0
    %v1251 = vadd.f32 %v1202, %v1250
    %v1252 = vpop.f32.mrf.mxu0
    %v1253 = vadd.f32 %v1204, %v1252
    %1254 = vmatmul.bf16.gmra.mxu0 %v678
    %v1255 = vpop.f32.mrf.mxu0
    %v1256 = vadd.f32 %v1207, %v1255
    %v1257 = vpop.f32.mrf.mxu0
    %v1258 = vadd.f32 %v1209, %v1257
    %1259 = vmatmul.bf16.gmra.mxu0 %v683
    %v1260 = vpop.f32.mrf.mxu0
    %v1261 = vadd.f32 %v1212, %v1260
    %v1262 = vpop.f32.mrf.mxu0
    %v1263 = vadd.f32 %v1214, %v1262
    %1264 = vmatmul.bf16.gmra.mxu0 %v688
    %v1265 = vpop.f32.mrf.mxu0
    %v1266 = vadd.f32 %v1217, %v1265
    %v1267 = vpop.f32.mrf.mxu0
    %v1268 = vadd.f32 %v1219, %v1267
    %1269 = vmatmul.bf16.gmra.mxu0 %v693
    %v1270 = vpop.f32.mrf.mxu0
    %v1271 = vadd.f32 %v1222, %v1270
    %v1272 = vpop.f32.mrf.mxu0
    %v1273 = vadd.f32 %v1224, %v1272
    %1274 = vdwg.mxu0
    %1275 = vmatpush.bf16.msra.mxu0 %v1063
    %1276 = vmatpush.bf16.msra.mxu0 %v1061
    %1277 = vmatpush.bf16.msra.mxu0 %v1059
    %1278 = vmatpush.bf16.msra.mxu0 %v1057
    %1279 = vmatpush.bf16.msra.mxu0 %v1055
    %1280 = vmatpush.bf16.msra.mxu0 %v1053
    %1281 = vmatpush.bf16.msra.mxu0 %v1051
    %1282 = vmatpush.bf16.msra.mxu0 %v1049
    %1283 = vmatmul.bf16.gmra.mxu0 %v659
    %v1284 = vpop.f32.mrf.mxu0
    %v1285 = vadd.f32 %v1236, %v1284
    %v1286 = vpop.f32.mrf.mxu0
    %v1287 = vadd.f32 %v1238, %v1286
    %1288 = vmatmul.bf16.gmra.mxu0 %v664
    %v1289 = vpop.f32.mrf.mxu0
    %v1290 = vadd.f32 %v1241, %v1289
    %v1291 = vpop.f32.mrf.mxu0
    %v1292 = vadd.f32 %v1243, %v1291
    %1293 = vmatmul.bf16.gmra.mxu0 %v669
    %v1294 = vpop.f32.mrf.mxu0
    %v1295 = vadd.f32 %v1246, %v1294
    %v1296 = vpop.f32.mrf.mxu0
    %v1297 = vadd.f32 %v1248, %v1296
    %1298 = vmatmul.bf16.gmra.mxu0 %v674
    %v1299 = vpop.f32.mrf.mxu0
    %v1300 = vadd.f32 %v1251, %v1299
    %v1301 = vpop.f32.mrf.mxu0
    %v1302 = vadd.f32 %v1253, %v1301
    %1303 = vmatmul.bf16.gmra.mxu0 %v679
    %v1304 = vpop.f32.mrf.mxu0
    %v1305 = vadd.f32 %v1256, %v1304
    %v1306 = vpop.f32.mrf.mxu0
    %v1307 = vadd.f32 %v1258, %v1306
    %1308 = vmatmul.bf16.gmra.mxu0 %v684
    %v1309 = vpop.f32.mrf.mxu0
    %v1310 = vadd.f32 %v1261, %v1309
    %v1311 = vpop.f32.mrf.mxu0
    %v1312 = vadd.f32 %v1263, %v1311
    %1313 = vmatmul.bf16.gmra.mxu0 %v689
    %v1314 = vpop.f32.mrf.mxu0
    %v1315 = vadd.f32 %v1266, %v1314
    %v1316 = vpop.f32.mrf.mxu0
    %v1317 = vadd.f32 %v1268, %v1316
    %1318 = vmatmul.bf16.gmra.mxu0 %v694
    %v1319 = vpop.f32.mrf.mxu0
    %v1320 = vadd.f32 %v1271, %v1319
    %v1321 = vpop.f32.mrf.mxu0
    %v1322 = vadd.f32 %v1273, %v1321
    %1323 = vdwg.mxu0
    %1324 = vmatpush.bf16.msra.mxu0 %v1079
    %1325 = vmatpush.bf16.msra.mxu0 %v1077
    %1326 = vmatpush.bf16.msra.mxu0 %v1075
    %1327 = vmatpush.bf16.msra.mxu0 %v1073
    %1328 = vmatpush.bf16.msra.mxu0 %v1071
    %1329 = vmatpush.bf16.msra.mxu0 %v1069
    %1330 = vmatpush.bf16.msra.mxu0 %v1067
    %1331 = vmatpush.bf16.msra.mxu0 %v1065
    %1332 = vmatmul.bf16.gmra.mxu0 %v660
    %v1333 = vpop.f32.mrf.mxu0
    %v1334 = vadd.f32 %v1285, %v1333
    %v1335 = vpop.f32.mrf.mxu0
    %v1336 = vadd.f32 %v1287, %v1335
    %1337 = vmatmul.bf16.gmra.mxu0 %v665
    %v1338 = vpop.f32.mrf.mxu0
    %v1339 = vadd.f32 %v1290, %v1338
    %v1340 = vpop.f32.mrf.mxu0
    %v1341 = vadd.f32 %v1292, %v1340
    %1342 = vmatmul.bf16.gmra.mxu0 %v670
    %v1343 = vpop.f32.mrf.mxu0
    %v1344 = vadd.f32 %v1295, %v1343
    %v1345 = vpop.f32.mrf.mxu0
    %v1346 = vadd.f32 %v1297, %v1345
    %1347 = vmatmul.bf16.gmra.mxu0 %v675
    %v1348 = vpop.f32.mrf.mxu0
    %v1349 = vadd.f32 %v1300, %v1348
    %v1350 = vpop.f32.mrf.mxu0
    %v1351 = vadd.f32 %v1302, %v1350
    %1352 = vmatmul.bf16.gmra.mxu0 %v680
    %v1353 = vpop.f32.mrf.mxu0
    %v1354 = vadd.f32 %v1305, %v1353
    %v1355 = vpop.f32.mrf.mxu0
    %v1356 = vadd.f32 %v1307, %v1355
    %1357 = vmatmul.bf16.gmra.mxu0 %v685
    %v1358 = vpop.f32.mrf.mxu0
    %v1359 = vadd.f32 %v1310, %v1358
    %v1360 = vpop.f32.mrf.mxu0
    %v1361 = vadd.f32 %v1312, %v1360
    %1362 = vmatmul.bf16.gmra.mxu0 %v690
    %v1363 = vpop.f32.mrf.mxu0
    %v1364 = vadd.f32 %v1315, %v1363
    %v1365 = vpop.f32.mrf.mxu0
    %v1366 = vadd.f32 %v1317, %v1365
    %1367 = vmatmul.bf16.gmra.mxu0 %v695
    %v1368 = vpop.f32.mrf.mxu0
    %v1369 = vadd.f32 %v1320, %v1368
    %v1370 = vpop.f32.mrf.mxu0
    %v1371 = vadd.f32 %v1322, %v1370
    %1372 = vdwg.mxu0
    %1373 = vmatpush.bf16.msra.mxu0 %v1095
    %1374 = vmatpush.bf16.msra.mxu0 %v1093
    %1375 = vmatpush.bf16.msra.mxu0 %v1091
    %1376 = vmatpush.bf16.msra.mxu0 %v1089
    %1377 = vmatpush.bf16.msra.mxu0 %v1087
    %1378 = vmatpush.bf16.msra.mxu0 %v1085
    %1379 = vmatpush.bf16.msra.mxu0 %v1083
    %1380 = vmatpush.bf16.msra.mxu0 %v1081
    %1381 = vmatmul.bf16.gmra.mxu0 %v661
    %v1382 = vpop.f32.mrf.mxu0
    %v1383 = vadd.f32 %v1334, %v1382
    %v1384 = vpop.f32.mrf.mxu0
    %v1385 = vadd.f32 %v1336, %v1384
    %1386 = vmatmul.bf16.gmra.mxu0 %v666
    %v1387 = vpop.f32.mrf.mxu0
    %v1388 = vadd.f32 %v1339, %v1387
    %v1389 = vpop.f32.mrf.mxu0
    %v1390 = vadd.f32 %v1341, %v1389
    %1391 = vmatmul.bf16.gmra.mxu0 %v671
    %v1392 = vpop.f32.mrf.mxu0
    %v1393 = vadd.f32 %v1344, %v1392
    %v1394 = vpop.f32.mrf.mxu0
    %v1395 = vadd.f32 %v1346, %v1394
    %1396 = vmatmul.bf16.gmra.mxu0 %v676
    %v1397 = vpop.f32.mrf.mxu0
    %v1398 = vadd.f32 %v1349, %v1397
    %v1399 = vpop.f32.mrf.mxu0
    %v1400 = vadd.f32 %v1351, %v1399
    %1401 = vmatmul.bf16.gmra.mxu0 %v681
    %v1402 = vpop.f32.mrf.mxu0
    %v1403 = vadd.f32 %v1354, %v1402
    %v1404 = vpop.f32.mrf.mxu0
    %v1405 = vadd.f32 %v1356, %v1404
    %1406 = vmatmul.bf16.gmra.mxu0 %v686
    %v1407 = vpop.f32.mrf.mxu0
    %v1408 = vadd.f32 %v1359, %v1407
    %v1409 = vpop.f32.mrf.mxu0
    %v1410 = vadd.f32 %v1361, %v1409
    %1411 = vmatmul.bf16.gmra.mxu0 %v691
    %v1412 = vpop.f32.mrf.mxu0
    %v1413 = vadd.f32 %v1364, %v1412
    %v1414 = vpop.f32.mrf.mxu0
    %v1415 = vadd.f32 %v1366, %v1414
    %1416 = vmatmul.bf16.gmra.mxu0 %v696
    %v1417 = vpop.f32.mrf.mxu0
    %v1418 = vadd.f32 %v1369, %v1417
    %v1419 = vpop.f32.mrf.mxu0
    %v1420 = vadd.f32 %v1371, %v1419
    %1421 = vdwg.mxu0
    %1422 = vmatpush.bf16.msra.mxu0 %v1032
    %1423 = vmatpush.bf16.msra.mxu0 %v1030
    %1424 = vmatpush.bf16.msra.mxu0 %v1028
    %1425 = vmatpush.bf16.msra.mxu0 %v1026
    %1426 = vmatpush.bf16.msra.mxu0 %v1024
    %1427 = vmatpush.bf16.msra.mxu0 %v1022
    %1428 = vmatpush.bf16.msra.mxu0 %v1020
    %1429 = vmatpush.bf16.msra.mxu0 %v1018
    %1430 = vmatmul.bf16.gmra.mxu0 %v657
    %v1431 = vpop.f32.mrf.mxu0
    %v1432 = vadd.f32 0.0, %v1431
    %v1433 = vpop.f32.mrf.mxu0
    %v1434 = vadd.f32 0.0, %v1433
    %1435 = vmatmul.bf16.gmra.mxu0 %v662
    %v1436 = vpop.f32.mrf.mxu0
    %v1437 = vadd.f32 0.0, %v1436
    %v1438 = vpop.f32.mrf.mxu0
    %v1439 = vadd.f32 0.0, %v1438
    %1440 = vmatmul.bf16.gmra.mxu0 %v667
    %v1441 = vpop.f32.mrf.mxu0
    %v1442 = vadd.f32 0.0, %v1441
    %v1443 = vpop.f32.mrf.mxu0
    %v1444 = vadd.f32 0.0, %v1443
    %1445 = vmatmul.bf16.gmra.mxu0 %v672
    %v1446 = vpop.f32.mrf.mxu0
    %v1447 = vadd.f32 0.0, %v1446
    %v1448 = vpop.f32.mrf.mxu0
    %v1449 = vadd.f32 0.0, %v1448
    %1450 = vmatmul.bf16.gmra.mxu0 %v677
    %v1451 = vpop.f32.mrf.mxu0
    %v1452 = vadd.f32 0.0, %v1451
    %v1453 = vpop.f32.mrf.mxu0
    %v1454 = vadd.f32 0.0, %v1453
    %1455 = vmatmul.bf16.gmra.mxu0 %v682
    %v1456 = vpop.f32.mrf.mxu0
    %v1457 = vadd.f32 0.0, %v1456
    %v1458 = vpop.f32.mrf.mxu0
    %v1459 = vadd.f32 0.0, %v1458
    %1460 = vmatmul.bf16.gmra.mxu0 %v687
    %v1461 = vpop.f32.mrf.mxu0
    %v1462 = vadd.f32 0.0, %v1461
    %v1463 = vpop.f32.mrf.mxu0
    %v1464 = vadd.f32 0.0, %v1463
    %1465 = vmatmul.bf16.gmra.mxu0 %v692
    %v1466 = vpop.f32.mrf.mxu0
    %v1467 = vadd.f32 0.0, %v1466
    %v1468 = vpop.f32.mrf.mxu0
    %v1469 = vadd.f32 0.0, %v1468
    %1470 = vdwg.mxu0
    %1471 = vmatpush.bf16.msra.mxu0 %v1048
    %1472 = vmatpush.bf16.msra.mxu0 %v1046
    %1473 = vmatpush.bf16.msra.mxu0 %v1044
    %1474 = vmatpush.bf16.msra.mxu0 %v1042
    %1475 = vmatpush.bf16.msra.mxu0 %v1040
    %1476 = vmatpush.bf16.msra.mxu0 %v1038
    %1477 = vmatpush.bf16.msra.mxu0 %v1036
    %1478 = vmatpush.bf16.msra.mxu0 %v1034
    %1479 = vmatmul.bf16.gmra.mxu0 %v658
    %v1480 = vpop.f32.mrf.mxu0
    %v1481 = vadd.f32 %v1432, %v1480
    %v1482 = vpop.f32.mrf.mxu0
    %v1483 = vadd.f32 %v1434, %v1482
    %1484 = vmatmul.bf16.gmra.mxu0 %v663
    %v1485 = vpop.f32.mrf.mxu0
    %v1486 = vadd.f32 %v1437, %v1485
    %v1487 = vpop.f32.mrf.mxu0
    %v1488 = vadd.f32 %v1439, %v1487
    %1489 = vmatmul.bf16.gmra.mxu0 %v668
    %v1490 = vpop.f32.mrf.mxu0
    %v1491 = vadd.f32 %v1442, %v1490
    %v1492 = vpop.f32.mrf.mxu0
    %v1493 = vadd.f32 %v1444, %v1492
    %1494 = vmatmul.bf16.gmra.mxu0 %v673
    %v1495 = vpop.f32.mrf.mxu0
    %v1496 = vadd.f32 %v1447, %v1495
    %v1497 = vpop.f32.mrf.mxu0
    %v1498 = vadd.f32 %v1449, %v1497
    %1499 = vmatmul.bf16.gmra.mxu0 %v678
    %v1500 = vpop.f32.mrf.mxu0
    %v1501 = vadd.f32 %v1452, %v1500
    %v1502 = vpop.f32.mrf.mxu0
    %v1503 = vadd.f32 %v1454, %v1502
    %1504 = vmatmul.bf16.gmra.mxu0 %v683
    %v1505 = vpop.f32.mrf.mxu0
    %v1506 = vadd.f32 %v1457, %v1505
    %v1507 = vpop.f32.mrf.mxu0
    %v1508 = vadd.f32 %v1459, %v1507
    %1509 = vmatmul.bf16.gmra.mxu0 %v688
    %v1510 = vpop.f32.mrf.mxu0
    %v1511 = vadd.f32 %v1462, %v1510
    %v1512 = vpop.f32.mrf.mxu0
    %v1513 = vadd.f32 %v1464, %v1512
    %1514 = vmatmul.bf16.gmra.mxu0 %v693
    %v1515 = vpop.f32.mrf.mxu0
    %v1516 = vadd.f32 %v1467, %v1515
    %v1517 = vpop.f32.mrf.mxu0
    %v1518 = vadd.f32 %v1469, %v1517
    %1519 = vdwg.mxu0
    %1520 = vmatpush.bf16.msra.mxu0 %v1064
    %1521 = vmatpush.bf16.msra.mxu0 %v1062
    %1522 = vmatpush.bf16.msra.mxu0 %v1060
    %1523 = vmatpush.bf16.msra.mxu0 %v1058
    %1524 = vmatpush.bf16.msra.mxu0 %v1056
    %1525 = vmatpush.bf16.msra.mxu0 %v1054
    %1526 = vmatpush.bf16.msra.mxu0 %v1052
    %1527 = vmatpush.bf16.msra.mxu0 %v1050
    %1528 = vmatmul.bf16.gmra.mxu0 %v659
    %v1529 = vpop.f32.mrf.mxu0
    %v1530 = vadd.f32 %v1481, %v1529
    %v1531 = vpop.f32.mrf.mxu0
    %v1532 = vadd.f32 %v1483, %v1531
    %1533 = vmatmul.bf16.gmra.mxu0 %v664
    %v1534 = vpop.f32.mrf.mxu0
    %v1535 = vadd.f32 %v1486, %v1534
    %v1536 = vpop.f32.mrf.mxu0
    %v1537 = vadd.f32 %v1488, %v1536
    %1538 = vmatmul.bf16.gmra.mxu0 %v669
    %v1539 = vpop.f32.mrf.mxu0
    %v1540 = vadd.f32 %v1491, %v1539
    %v1541 = vpop.f32.mrf.mxu0
    %v1542 = vadd.f32 %v1493, %v1541
    %1543 = vmatmul.bf16.gmra.mxu0 %v674
    %v1544 = vpop.f32.mrf.mxu0
    %v1545 = vadd.f32 %v1496, %v1544
    %v1546 = vpop.f32.mrf.mxu0
    %v1547 = vadd.f32 %v1498, %v1546
    %1548 = vmatmul.bf16.gmra.mxu0 %v679
    %v1549 = vpop.f32.mrf.mxu0
    %v1550 = vadd.f32 %v1501, %v1549
    %v1551 = vpop.f32.mrf.mxu0
    %v1552 = vadd.f32 %v1503, %v1551
    %1553 = vmatmul.bf16.gmra.mxu0 %v684
    %v1554 = vpop.f32.mrf.mxu0
    %v1555 = vadd.f32 %v1506, %v1554
    %v1556 = vpop.f32.mrf.mxu0
    %v1557 = vadd.f32 %v1508, %v1556
    %1558 = vmatmul.bf16.gmra.mxu0 %v689
    %v1559 = vpop.f32.mrf.mxu0
    %v1560 = vadd.f32 %v1511, %v1559
    %v1561 = vpop.f32.mrf.mxu0
    %v1562 = vadd.f32 %v1513, %v1561
    %1563 = vmatmul.bf16.gmra.mxu0 %v694
    %v1564 = vpop.f32.mrf.mxu0
    %v1565 = vadd.f32 %v1516, %v1564
    %v1566 = vpop.f32.mrf.mxu0
    %v1567 = vadd.f32 %v1518, %v1566
    %1568 = vdwg.mxu0
    %1569 = vmatpush.bf16.msra.mxu0 %v1080
    %1570 = vmatpush.bf16.msra.mxu0 %v1078
    %1571 = vmatpush.bf16.msra.mxu0 %v1076
    %1572 = vmatpush.bf16.msra.mxu0 %v1074
    %1573 = vmatpush.bf16.msra.mxu0 %v1072
    %1574 = vmatpush.bf16.msra.mxu0 %v1070
    %1575 = vmatpush.bf16.msra.mxu0 %v1068
    %1576 = vmatpush.bf16.msra.mxu0 %v1066
    %1577 = vmatmul.bf16.gmra.mxu0 %v660
    %v1578 = vpop.f32.mrf.mxu0
    %v1579 = vadd.f32 %v1530, %v1578
    %v1580 = vpop.f32.mrf.mxu0
    %v1581 = vadd.f32 %v1532, %v1580
    %1582 = vmatmul.bf16.gmra.mxu0 %v665
    %v1583 = vpop.f32.mrf.mxu0
    %v1584 = vadd.f32 %v1535, %v1583
    %v1585 = vpop.f32.mrf.mxu0
    %v1586 = vadd.f32 %v1537, %v1585
    %1587 = vmatmul.bf16.gmra.mxu0 %v670
    %v1588 = vpop.f32.mrf.mxu0
    %v1589 = vadd.f32 %v1540, %v1588
    %v1590 = vpop.f32.mrf.mxu0
    %v1591 = vadd.f32 %v1542, %v1590
    %1592 = vmatmul.bf16.gmra.mxu0 %v675
    %v1593 = vpop.f32.mrf.mxu0
    %v1594 = vadd.f32 %v1545, %v1593
    %v1595 = vpop.f32.mrf.mxu0
    %v1596 = vadd.f32 %v1547, %v1595
    %1597 = vmatmul.bf16.gmra.mxu0 %v680
    %v1598 = vpop.f32.mrf.mxu0
    %v1599 = vadd.f32 %v1550, %v1598
    %v1600 = vpop.f32.mrf.mxu0
    %v1601 = vadd.f32 %v1552, %v1600
    %1602 = vmatmul.bf16.gmra.mxu0 %v685
    %v1603 = vpop.f32.mrf.mxu0
    %v1604 = vadd.f32 %v1555, %v1603
    %v1605 = vpop.f32.mrf.mxu0
    %v1606 = vadd.f32 %v1557, %v1605
    %1607 = vmatmul.bf16.gmra.mxu0 %v690
    %v1608 = vpop.f32.mrf.mxu0
    %v1609 = vadd.f32 %v1560, %v1608
    %v1610 = vpop.f32.mrf.mxu0
    %v1611 = vadd.f32 %v1562, %v1610
    %1612 = vmatmul.bf16.gmra.mxu0 %v695
    %v1613 = vpop.f32.mrf.mxu0
    %v1614 = vadd.f32 %v1565, %v1613
    %v1615 = vpop.f32.mrf.mxu0
    %v1616 = vadd.f32 %v1567, %v1615
    %1617 = vdwg.mxu0
    %1618 = vmatpush.bf16.msra.mxu0 %v1096
    %1619 = vmatpush.bf16.msra.mxu0 %v1094
    %1620 = vmatpush.bf16.msra.mxu0 %v1092
    %1621 = vmatpush.bf16.msra.mxu0 %v1090
    %1622 = vmatpush.bf16.msra.mxu0 %v1088
    %1623 = vmatpush.bf16.msra.mxu0 %v1086
    %1624 = vmatpush.bf16.msra.mxu0 %v1084
    %1625 = vmatpush.bf16.msra.mxu0 %v1082
    %1626 = vmatmul.bf16.gmra.mxu0 %v661
    %v1627 = vpop.f32.mrf.mxu0
    %v1628 = vadd.f32 %v1579, %v1627
    %v1629 = vpop.f32.mrf.mxu0
    %v1630 = vadd.f32 %v1581, %v1629
    %1631 = vmatmul.bf16.gmra.mxu0 %v666
    %v1632 = vpop.f32.mrf.mxu0
    %v1633 = vadd.f32 %v1584, %v1632
    %v1634 = vpop.f32.mrf.mxu0
    %v1635 = vadd.f32 %v1586, %v1634
    %1636 = vmatmul.bf16.gmra.mxu0 %v671
    %v1637 = vpop.f32.mrf.mxu0
    %v1638 = vadd.f32 %v1589, %v1637
    %v1639 = vpop.f32.mrf.mxu0
    %v1640 = vadd.f32 %v1591, %v1639
    %1641 = vmatmul.bf16.gmra.mxu0 %v676
    %v1642 = vpop.f32.mrf.mxu0
    %v1643 = vadd.f32 %v1594, %v1642
    %v1644 = vpop.f32.mrf.mxu0
    %v1645 = vadd.f32 %v1596, %v1644
    %1646 = vmatmul.bf16.gmra.mxu0 %v681
    %v1647 = vpop.f32.mrf.mxu0
    %v1648 = vadd.f32 %v1599, %v1647
    %v1649 = vpop.f32.mrf.mxu0
    %v1650 = vadd.f32 %v1601, %v1649
    %1651 = vmatmul.bf16.gmra.mxu0 %v686
    %v1652 = vpop.f32.mrf.mxu0
    %v1653 = vadd.f32 %v1604, %v1652
    %v1654 = vpop.f32.mrf.mxu0
    %v1655 = vadd.f32 %v1606, %v1654
    %1656 = vmatmul.bf16.gmra.mxu0 %v691
    %v1657 = vpop.f32.mrf.mxu0
    %v1658 = vadd.f32 %v1609, %v1657
    %v1659 = vpop.f32.mrf.mxu0
    %v1660 = vadd.f32 %v1611, %v1659
    %1661 = vmatmul.bf16.gmra.mxu0 %v696
    %v1662 = vpop.f32.mrf.mxu0
    %v1663 = vadd.f32 %v1614, %v1662
    %v1664 = vpop.f32.mrf.mxu0
    %v1665 = vadd.f32 %v1616, %v1664
    %1666 = vdwg.mxu0
    %v1667 = vsub.f32 1.0, %v187
    %v1668 = vsub.f32 1.0, %v188
    %v1669 = vsub.f32 1.0, %v189
    %v1670 = vsub.f32 1.0, %v190
    %v1671 = vsub.f32 1.0, %v191
    %v1672 = vsub.f32 1.0, %v192
    %v1673 = vsub.f32 1.0, %v193
    %v1674 = vsub.f32 1.0, %v194
    %1676 = vset.pattern.permute.xlu0 1
    %1677 = vperm.xlu0 %1676, %v1667
    %v1678 = vpop.permute.xlu0 %1677
    %1681 = vset.pattern.permute.xlu0 1
    %1682 = vperm.xlu0 %1681, %v1668
    %v1683 = vpop.permute.xlu0 %1682
    %1686 = vset.pattern.permute.xlu0 1
    %1687 = vperm.xlu0 %1686, %v1669
    %v1688 = vpop.permute.xlu0 %1687
    %1691 = vset.pattern.permute.xlu0 1
    %1692 = vperm.xlu0 %1691, %v1670
    %v1693 = vpop.permute.xlu0 %1692
    %1696 = vset.pattern.permute.xlu0 1
    %1697 = vperm.xlu0 %1696, %v1671
    %v1698 = vpop.permute.xlu0 %1697
    %1701 = vset.pattern.permute.xlu0 1
    %1702 = vperm.xlu0 %1701, %v1672
    %v1703 = vpop.permute.xlu0 %1702
    %1706 = vset.pattern.permute.xlu0 1
    %1707 = vperm.xlu0 %1706, %v1673
    %v1708 = vpop.permute.xlu0 %1707
    %1711 = vset.pattern.permute.xlu0 1
    %1712 = vperm.xlu0 %1711, %v1674
    %v1713 = vpop.permute.xlu0 %1712
    %v1715 = vmul.f32 %v1678, %v1383
    %v1716 = vmul.f32 %v1678, %v1628
    %v1717 = vmul.f32 %v1683, %v1385
    %v1718 = vmul.f32 %v1683, %v1630
    %v1719 = vmul.f32 %v1688, %v1388
    %v1720 = vmul.f32 %v1688, %v1633
    %v1721 = vmul.f32 %v1693, %v1390
    %v1722 = vmul.f32 %v1693, %v1635
    %v1723 = vmul.f32 %v1698, %v1393
    %v1724 = vmul.f32 %v1698, %v1638
    %v1725 = vmul.f32 %v1703, %v1395
    %v1726 = vmul.f32 %v1703, %v1640
    %v1727 = vmul.f32 %v1708, %v1398
    %v1728 = vmul.f32 %v1708, %v1643
    %v1729 = vmul.f32 %v1713, %v1400
    %v1730 = vmul.f32 %v1713, %v1645
    %1732 = vset.pattern.permute.xlu0 1
    %1733 = vperm.xlu0 %1732, %v187
    %v1734 = vpop.permute.xlu0 %1733
    %1737 = vset.pattern.permute.xlu0 1
    %1738 = vperm.xlu0 %1737, %v188
    %v1739 = vpop.permute.xlu0 %1738
    %1742 = vset.pattern.permute.xlu0 1
    %1743 = vperm.xlu0 %1742, %v189
    %v1744 = vpop.permute.xlu0 %1743
    %1747 = vset.pattern.permute.xlu0 1
    %1748 = vperm.xlu0 %1747, %v190
    %v1749 = vpop.permute.xlu0 %1748
    %1752 = vset.pattern.permute.xlu0 1
    %1753 = vperm.xlu0 %1752, %v191
    %v1754 = vpop.permute.xlu0 %1753
    %1757 = vset.pattern.permute.xlu0 1
    %1758 = vperm.xlu0 %1757, %v192
    %v1759 = vpop.permute.xlu0 %1758
    %1762 = vset.pattern.permute.xlu0 1
    %1763 = vperm.xlu0 %1762, %v193
    %v1764 = vpop.permute.xlu0 %1763
    %1767 = vset.pattern.permute.xlu0 1
    %1768 = vperm.xlu0 %1767, %v194
    %v1769 = vpop.permute.xlu0 %1768
    %v1771 = vmul.f32 %v1734, %v1403
    %v1772 = vmul.f32 %v1734, %v1648
    %v1773 = vmul.f32 %v1739, %v1405
    %v1774 = vmul.f32 %v1739, %v1650
    %v1775 = vmul.f32 %v1744, %v1408
    %v1776 = vmul.f32 %v1744, %v1653
    %v1777 = vmul.f32 %v1749, %v1410
    %v1778 = vmul.f32 %v1749, %v1655
    %v1779 = vmul.f32 %v1754, %v1413
    %v1780 = vmul.f32 %v1754, %v1658
    %v1781 = vmul.f32 %v1759, %v1415
    %v1782 = vmul.f32 %v1759, %v1660
    %v1783 = vmul.f32 %v1764, %v1418
    %v1784 = vmul.f32 %v1764, %v1663
    %v1785 = vmul.f32 %v1769, %v1420
    %v1786 = vmul.f32 %v1769, %v1665
    %v1787 = vadd.f32 %v1715, %v1771
    %v1788 = vadd.f32 %v1716, %v1772
    %v1789 = vadd.f32 %v1717, %v1773
    %v1790 = vadd.f32 %v1718, %v1774
    %v1791 = vadd.f32 %v1719, %v1775
    %v1792 = vadd.f32 %v1720, %v1776
    %v1793 = vadd.f32 %v1721, %v1777
    %v1794 = vadd.f32 %v1722, %v1778
    %v1795 = vadd.f32 %v1723, %v1779
    %v1796 = vadd.f32 %v1724, %v1780
    %v1797 = vadd.f32 %v1725, %v1781
    %v1798 = vadd.f32 %v1726, %v1782
    %v1799 = vadd.f32 %v1727, %v1783
    %v1800 = vadd.f32 %v1728, %v1784
    %v1801 = vadd.f32 %v1729, %v1785
    %v1802 = vadd.f32 %v1730, %v1786
    %1803 = vset.pattern.permute.xlu0 0
    %1804 = vperm.xlu0 %1803, %v195
    %v1805 = vpop.permute.xlu0 %1804
    %1806 = vset.pattern.permute.xlu0 0
    %1807 = vperm.xlu0 %1806, %v196
    %v1808 = vpop.permute.xlu0 %1807
    %1809 = vset.pattern.permute.xlu0 0
    %1810 = vperm.xlu0 %1809, %v197
    %v1811 = vpop.permute.xlu0 %1810
    %1812 = vset.pattern.permute.xlu0 0
    %1813 = vperm.xlu0 %1812, %v198
    %v1814 = vpop.permute.xlu0 %1813
    %1815 = vset.pattern.permute.xlu0 0
    %1816 = vperm.xlu0 %1815, %v199
    %v1817 = vpop.permute.xlu0 %1816
    %1818 = vset.pattern.permute.xlu0 0
    %1819 = vperm.xlu0 %1818, %v200
    %v1820 = vpop.permute.xlu0 %1819
    %1821 = vset.pattern.permute.xlu0 0
    %1822 = vperm.xlu0 %1821, %v201
    %v1823 = vpop.permute.xlu0 %1822
    %1824 = vset.pattern.permute.xlu0 0
    %1825 = vperm.xlu0 %1824, %v202
    %v1826 = vpop.permute.xlu0 %1825
    %vm1827 = vcmp.eq.s32.totalorder %v364, %v1805
    %vm1828 = vcmp.eq.s32.totalorder %v364, %v1808
    %vm1829 = vcmp.eq.s32.totalorder %v364, %v1811
    %vm1830 = vcmp.eq.s32.totalorder %v364, %v1814
    %vm1831 = vcmp.eq.s32.totalorder %v364, %v1817
    %vm1832 = vcmp.eq.s32.totalorder %v364, %v1820
    %vm1833 = vcmp.eq.s32.totalorder %v364, %v1823
    %vm1834 = vcmp.eq.s32.totalorder %v364, %v1826
    %v1835 = vsel %vm1827, 1, 0
    %v1836 = vsel %vm1828, 1, 0
    %v1837 = vsel %vm1829, 1, 0
    %v1838 = vsel %vm1830, 1, 0
    %v1839 = vsel %vm1831, 1, 0
    %v1840 = vsel %vm1832, 1, 0
    %v1841 = vsel %vm1833, 1, 0
    %v1842 = vsel %vm1834, 1, 0
    %v1843 = vcvt.s32.f32 %v1835
    %v1844 = vcvt.s32.f32 %v1836
    %v1845 = vcvt.s32.f32 %v1837
    %v1846 = vcvt.s32.f32 %v1838
    %v1847 = vcvt.s32.f32 %v1839
    %v1848 = vcvt.s32.f32 %v1840
    %v1849 = vcvt.s32.f32 %v1841
    %v1850 = vcvt.s32.f32 %v1842
    %v1851 = vsub.f32 1.0, %v179
    %v1852 = vsub.f32 1.0, %v180
    %v1853 = vsub.f32 1.0, %v181
    %v1854 = vsub.f32 1.0, %v182
    %v1855 = vsub.f32 1.0, %v183
    %v1856 = vsub.f32 1.0, %v184
    %v1857 = vsub.f32 1.0, %v185
    %v1858 = vsub.f32 1.0, %v186
    %1860 = vset.pattern.permute.xlu0 0
    %1861 = vperm.xlu0 %1860, %v1851
    %v1862 = vpop.permute.xlu0 %1861
    %1865 = vset.pattern.permute.xlu0 0
    %1866 = vperm.xlu0 %1865, %v1852
    %v1867 = vpop.permute.xlu0 %1866
    %1870 = vset.pattern.permute.xlu0 0
    %1871 = vperm.xlu0 %1870, %v1853
    %v1872 = vpop.permute.xlu0 %1871
    %1875 = vset.pattern.permute.xlu0 0
    %1876 = vperm.xlu0 %1875, %v1854
    %v1877 = vpop.permute.xlu0 %1876
    %1880 = vset.pattern.permute.xlu0 0
    %1881 = vperm.xlu0 %1880, %v1855
    %v1882 = vpop.permute.xlu0 %1881
    %1885 = vset.pattern.permute.xlu0 0
    %1886 = vperm.xlu0 %1885, %v1856
    %v1887 = vpop.permute.xlu0 %1886
    %1890 = vset.pattern.permute.xlu0 0
    %1891 = vperm.xlu0 %1890, %v1857
    %v1892 = vpop.permute.xlu0 %1891
    %1895 = vset.pattern.permute.xlu0 0
    %1896 = vperm.xlu0 %1895, %v1858
    %v1897 = vpop.permute.xlu0 %1896
    %v1899 = vmul.f32 %v1843, %v1862
    %v1900 = vmul.f32 %v1844, %v1867
    %v1901 = vmul.f32 %v1845, %v1872
    %v1902 = vmul.f32 %v1846, %v1877
    %v1903 = vmul.f32 %v1847, %v1882
    %v1904 = vmul.f32 %v1848, %v1887
    %v1905 = vmul.f32 %v1849, %v1892
    %v1906 = vmul.f32 %v1850, %v1897
    %v1907 = vadd.s32 %v195, 1
    %v1908 = vadd.s32 %v196, 1
    %v1909 = vadd.s32 %v197, 1
    %v1910 = vadd.s32 %v198, 1
    %v1911 = vadd.s32 %v199, 1
    %v1912 = vadd.s32 %v200, 1
    %v1913 = vadd.s32 %v201, 1
    %v1914 = vadd.s32 %v202, 1
    %1915 = vset.pattern.permute.xlu0 0
    %1916 = vperm.xlu0 %1915, %v1907
    %v1917 = vpop.permute.xlu0 %1916
    %1918 = vset.pattern.permute.xlu0 0
    %1919 = vperm.xlu0 %1918, %v1908
    %v1920 = vpop.permute.xlu0 %1919
    %1921 = vset.pattern.permute.xlu0 0
    %1922 = vperm.xlu0 %1921, %v1909
    %v1923 = vpop.permute.xlu0 %1922
    %1924 = vset.pattern.permute.xlu0 0
    %1925 = vperm.xlu0 %1924, %v1910
    %v1926 = vpop.permute.xlu0 %1925
    %1927 = vset.pattern.permute.xlu0 0
    %1928 = vperm.xlu0 %1927, %v1911
    %v1929 = vpop.permute.xlu0 %1928
    %1930 = vset.pattern.permute.xlu0 0
    %1931 = vperm.xlu0 %1930, %v1912
    %v1932 = vpop.permute.xlu0 %1931
    %1933 = vset.pattern.permute.xlu0 0
    %1934 = vperm.xlu0 %1933, %v1913
    %v1935 = vpop.permute.xlu0 %1934
    %1936 = vset.pattern.permute.xlu0 0
    %1937 = vperm.xlu0 %1936, %v1914
    %v1938 = vpop.permute.xlu0 %1937
    %vm1939 = vcmp.eq.s32.totalorder %v364, %v1917
    %vm1940 = vcmp.eq.s32.totalorder %v364, %v1920
    %vm1941 = vcmp.eq.s32.totalorder %v364, %v1923
    %vm1942 = vcmp.eq.s32.totalorder %v364, %v1926
    %vm1943 = vcmp.eq.s32.totalorder %v364, %v1929
    %vm1944 = vcmp.eq.s32.totalorder %v364, %v1932
    %vm1945 = vcmp.eq.s32.totalorder %v364, %v1935
    %vm1946 = vcmp.eq.s32.totalorder %v364, %v1938
    %v1947 = vsel %vm1939, 1, 0
    %v1948 = vsel %vm1940, 1, 0
    %v1949 = vsel %vm1941, 1, 0
    %v1950 = vsel %vm1942, 1, 0
    %v1951 = vsel %vm1943, 1, 0
    %v1952 = vsel %vm1944, 1, 0
    %v1953 = vsel %vm1945, 1, 0
    %v1954 = vsel %vm1946, 1, 0
    %v1955 = vcvt.s32.f32 %v1947
    %v1956 = vcvt.s32.f32 %v1948
    %v1957 = vcvt.s32.f32 %v1949
    %v1958 = vcvt.s32.f32 %v1950
    %v1959 = vcvt.s32.f32 %v1951
    %v1960 = vcvt.s32.f32 %v1952
    %v1961 = vcvt.s32.f32 %v1953
    %v1962 = vcvt.s32.f32 %v1954
    %1964 = vset.pattern.permute.xlu0 0
    %1965 = vperm.xlu0 %1964, %v179
    %v1966 = vpop.permute.xlu0 %1965
    %1969 = vset.pattern.permute.xlu0 0
    %1970 = vperm.xlu0 %1969, %v180
    %v1971 = vpop.permute.xlu0 %1970
    %1974 = vset.pattern.permute.xlu0 0
    %1975 = vperm.xlu0 %1974, %v181
    %v1976 = vpop.permute.xlu0 %1975
    %1979 = vset.pattern.permute.xlu0 0
    %1980 = vperm.xlu0 %1979, %v182
    %v1981 = vpop.permute.xlu0 %1980
    %1984 = vset.pattern.permute.xlu0 0
    %1985 = vperm.xlu0 %1984, %v183
    %v1986 = vpop.permute.xlu0 %1985
    %1989 = vset.pattern.permute.xlu0 0
    %1990 = vperm.xlu0 %1989, %v184
    %v1991 = vpop.permute.xlu0 %1990
    %1994 = vset.pattern.permute.xlu0 0
    %1995 = vperm.xlu0 %1994, %v185
    %v1996 = vpop.permute.xlu0 %1995
    %1999 = vset.pattern.permute.xlu0 0
    %2000 = vperm.xlu0 %1999, %v186
    %v2001 = vpop.permute.xlu0 %2000
    %v2003 = vmul.f32 %v1955, %v1966
    %v2004 = vmul.f32 %v1956, %v1971
    %v2005 = vmul.f32 %v1957, %v1976
    %v2006 = vmul.f32 %v1958, %v1981
    %v2007 = vmul.f32 %v1959, %v1986
    %v2008 = vmul.f32 %v1960, %v1991
    %v2009 = vmul.f32 %v1961, %v1996
    %v2010 = vmul.f32 %v1962, %v2001
    %v2011 = vadd.f32 %v1899, %v2003
    %v2012 = vadd.f32 %v1900, %v2004
    %v2013 = vadd.f32 %v1901, %v2005
    %v2014 = vadd.f32 %v1902, %v2006
    %v2015 = vadd.f32 %v1903, %v2007
    %v2016 = vadd.f32 %v1904, %v2008
    %v2017 = vadd.f32 %v1905, %v2009
    %v2018 = vadd.f32 %v1906, %v2010
    %2019 = vset.pattern.permute.xlu0 0
    %2020 = vperm.xlu0 %2019, %v35
    %v2021 = vpop.permute.xlu0 %2020
    %2022 = vset.pattern.permute.xlu0 0
    %2023 = vperm.xlu0 %2022, %v36
    %v2024 = vpop.permute.xlu0 %2023
    %2025 = vset.pattern.permute.xlu0 0
    %2026 = vperm.xlu0 %2025, %v37
    %v2027 = vpop.permute.xlu0 %2026
    %2028 = vset.pattern.permute.xlu0 0
    %2029 = vperm.xlu0 %2028, %v38
    %v2030 = vpop.permute.xlu0 %2029
    %2031 = vset.pattern.permute.xlu0 0
    %2032 = vperm.xlu0 %2031, %v39
    %v2033 = vpop.permute.xlu0 %2032
    %2034 = vset.pattern.permute.xlu0 0
    %2035 = vperm.xlu0 %2034, %v40
    %v2036 = vpop.permute.xlu0 %2035
    %2037 = vset.pattern.permute.xlu0 0
    %2038 = vperm.xlu0 %2037, %v41
    %v2039 = vpop.permute.xlu0 %2038
    %2040 = vset.pattern.permute.xlu0 0
    %2041 = vperm.xlu0 %2040, %v42
    %v2042 = vpop.permute.xlu0 %2041
    %vm2043 = vcmp.eq.s32.totalorder %v364, %v2021
    %vm2044 = vcmp.eq.s32.totalorder %v364, %v2024
    %vm2045 = vcmp.eq.s32.totalorder %v364, %v2027
    %vm2046 = vcmp.eq.s32.totalorder %v364, %v2030
    %vm2047 = vcmp.eq.s32.totalorder %v364, %v2033
    %vm2048 = vcmp.eq.s32.totalorder %v364, %v2036
    %vm2049 = vcmp.eq.s32.totalorder %v364, %v2039
    %vm2050 = vcmp.eq.s32.totalorder %v364, %v2042
    %v2051 = vsel %vm2043, 1, 0
    %v2052 = vsel %vm2044, 1, 0
    %v2053 = vsel %vm2045, 1, 0
    %v2054 = vsel %vm2046, 1, 0
    %v2055 = vsel %vm2047, 1, 0
    %v2056 = vsel %vm2048, 1, 0
    %v2057 = vsel %vm2049, 1, 0
    %v2058 = vsel %vm2050, 1, 0
    %v2059 = vcvt.s32.f32 %v2051
    %v2060 = vcvt.s32.f32 %v2052
    %v2061 = vcvt.s32.f32 %v2053
    %v2062 = vcvt.s32.f32 %v2054
    %v2063 = vcvt.s32.f32 %v2055
    %v2064 = vcvt.s32.f32 %v2056
    %v2065 = vcvt.s32.f32 %v2057
    %v2066 = vcvt.s32.f32 %v2058
    %v2067 = vmul.f32 %v1787, %v2011
    %v2068 = vmul.f32 %v1789, %v2012
    %v2069 = vmul.f32 %v1791, %v2013
    %v2070 = vmul.f32 %v1793, %v2014
    %v2071 = vmul.f32 %v1795, %v2015
    %v2072 = vmul.f32 %v1797, %v2016
    %v2073 = vmul.f32 %v1799, %v2017
    %v2074 = vmul.f32 %v1801, %v2018
    %vm2075 = vcmask 654336
    %v2076 = vsel %vm2075, %v2067, 0.0
    %2077 = vadd.xlane.f32.xlu0 %v2076
    %v2078 = vpop.xlane.xlu0 %2077
    %v2079 = vsel %vm2075, %v2068, 0.0
    %2080 = vadd.xlane.f32.xlu0 %v2079
    %v2081 = vpop.xlane.xlu0 %2080
    %v2082 = vsel %vm2075, %v2069, 0.0
    %2083 = vadd.xlane.f32.xlu0 %v2082
    %v2084 = vpop.xlane.xlu0 %2083
    %v2085 = vsel %vm2075, %v2070, 0.0
    %2086 = vadd.xlane.f32.xlu0 %v2085
    %v2087 = vpop.xlane.xlu0 %2086
    %v2088 = vsel %vm2075, %v2071, 0.0
    %2089 = vadd.xlane.f32.xlu0 %v2088
    %v2090 = vpop.xlane.xlu0 %2089
    %v2091 = vsel %vm2075, %v2072, 0.0
    %2092 = vadd.xlane.f32.xlu0 %v2091
    %v2093 = vpop.xlane.xlu0 %2092
    %v2094 = vsel %vm2075, %v2073, 0.0
    %2095 = vadd.xlane.f32.xlu0 %v2094
    %v2096 = vpop.xlane.xlu0 %2095
    %v2097 = vsel %vm2075, %v2074, 0.0
    %2098 = vadd.xlane.f32.xlu0 %v2097
    %v2099 = vpop.xlane.xlu0 %2098
    %v2100 = vmul.f32 %v2078, %v2059
    %v2101 = vmul.f32 %v2081, %v2060
    %v2102 = vmul.f32 %v2084, %v2061
    %v2103 = vmul.f32 %v2087, %v2062
    %v2104 = vmul.f32 %v2090, %v2063
    %v2105 = vmul.f32 %v2093, %v2064
    %v2106 = vmul.f32 %v2096, %v2065
    %v2107 = vmul.f32 %v2099, %v2066
    %2116 = vrot.lane.b32.xlu0 %v2011, 80
    %v2117 = vpop.permute.xlu0 %2116
    %2118 = vrot.lane.b32.xlu0 %v2012, 80
    %v2119 = vpop.permute.xlu0 %2118
    %2120 = vrot.lane.b32.xlu0 %v2013, 80
    %v2121 = vpop.permute.xlu0 %2120
    %2122 = vrot.lane.b32.xlu0 %v2014, 80
    %v2123 = vpop.permute.xlu0 %2122
    %2124 = vrot.lane.b32.xlu0 %v2015, 80
    %v2125 = vpop.permute.xlu0 %2124
    %2126 = vrot.lane.b32.xlu0 %v2016, 80
    %v2127 = vpop.permute.xlu0 %2126
    %2128 = vrot.lane.b32.xlu0 %v2017, 80
    %v2129 = vpop.permute.xlu0 %2128
    %2130 = vrot.lane.b32.xlu0 %v2018, 80
    %v2131 = vpop.permute.xlu0 %2130
    %v2140 = vmul.f32 %v1787, %v2117
    %v2141 = vmul.f32 %v1788, %v2117
    %v2142 = vmul.f32 %v1789, %v2119
    %v2143 = vmul.f32 %v1790, %v2119
    %v2144 = vmul.f32 %v1791, %v2121
    %v2145 = vmul.f32 %v1792, %v2121
    %v2146 = vmul.f32 %v1793, %v2123
    %v2147 = vmul.f32 %v1794, %v2123
    %v2148 = vmul.f32 %v1795, %v2125
    %v2149 = vmul.f32 %v1796, %v2125
    %v2150 = vmul.f32 %v1797, %v2127
    %v2151 = vmul.f32 %v1798, %v2127
    %v2152 = vmul.f32 %v1799, %v2129
    %v2153 = vmul.f32 %v1800, %v2129
    %v2154 = vmul.f32 %v1801, %v2131
    %v2155 = vmul.f32 %v1802, %v2131
    %2172 = vrot.lane.b32.xlu0 %v2140, 48
    %v2173 = vpop.permute.xlu0 %2172
    %2174 = vrot.lane.b32.xlu0 %v2141, 48
    %v2175 = vpop.permute.xlu0 %2174
    %2176 = vrot.lane.b32.xlu0 %v2142, 48
    %v2177 = vpop.permute.xlu0 %2176
    %2178 = vrot.lane.b32.xlu0 %v2143, 48
    %v2179 = vpop.permute.xlu0 %2178
    %2180 = vrot.lane.b32.xlu0 %v2144, 48
    %v2181 = vpop.permute.xlu0 %2180
    %2182 = vrot.lane.b32.xlu0 %v2145, 48
    %v2183 = vpop.permute.xlu0 %2182
    %2184 = vrot.lane.b32.xlu0 %v2146, 48
    %v2185 = vpop.permute.xlu0 %2184
    %2186 = vrot.lane.b32.xlu0 %v2147, 48
    %v2187 = vpop.permute.xlu0 %2186
    %2188 = vrot.lane.b32.xlu0 %v2148, 48
    %v2189 = vpop.permute.xlu0 %2188
    %2190 = vrot.lane.b32.xlu0 %v2149, 48
    %v2191 = vpop.permute.xlu0 %2190
    %2192 = vrot.lane.b32.xlu0 %v2150, 48
    %v2193 = vpop.permute.xlu0 %2192
    %2194 = vrot.lane.b32.xlu0 %v2151, 48
    %v2195 = vpop.permute.xlu0 %2194
    %2196 = vrot.lane.b32.xlu0 %v2152, 48
    %v2197 = vpop.permute.xlu0 %2196
    %2198 = vrot.lane.b32.xlu0 %v2153, 48
    %v2199 = vpop.permute.xlu0 %2198
    %2200 = vrot.lane.b32.xlu0 %v2154, 48
    %v2201 = vpop.permute.xlu0 %2200
    %2202 = vrot.lane.b32.xlu0 %v2155, 48
    %v2203 = vpop.permute.xlu0 %2202
    %vm2204 = vcmask 392192
    %v2205 = vsel %vm2204, %v2173, %v2175
    %v2206 = vsel %vm2204, %v2177, %v2179
    %v2207 = vsel %vm2204, %v2181, %v2183
    %v2208 = vsel %vm2204, %v2185, %v2187
    %v2209 = vsel %vm2204, %v2189, %v2191
    %v2210 = vsel %vm2204, %v2193, %v2195
    %v2211 = vsel %vm2204, %v2197, %v2199
    %v2212 = vsel %vm2204, %v2201, %v2203
    %v2221 = vsel %vm2075, %v2205, 0.0
    %2222 = vadd.xlane.f32.xlu0 %v2221
    %v2223 = vpop.xlane.xlu0 %2222
    %v2224 = vsel %vm2075, %v2206, 0.0
    %2225 = vadd.xlane.f32.xlu0 %v2224
    %v2226 = vpop.xlane.xlu0 %2225
    %v2227 = vsel %vm2075, %v2207, 0.0
    %2228 = vadd.xlane.f32.xlu0 %v2227
    %v2229 = vpop.xlane.xlu0 %2228
    %v2230 = vsel %vm2075, %v2208, 0.0
    %2231 = vadd.xlane.f32.xlu0 %v2230
    %v2232 = vpop.xlane.xlu0 %2231
    %v2233 = vsel %vm2075, %v2209, 0.0
    %2234 = vadd.xlane.f32.xlu0 %v2233
    %v2235 = vpop.xlane.xlu0 %2234
    %v2236 = vsel %vm2075, %v2210, 0.0
    %2237 = vadd.xlane.f32.xlu0 %v2236
    %v2238 = vpop.xlane.xlu0 %2237
    %v2239 = vsel %vm2075, %v2211, 0.0
    %2240 = vadd.xlane.f32.xlu0 %v2239
    %v2241 = vpop.xlane.xlu0 %2240
    %v2242 = vsel %vm2075, %v2212, 0.0
    %2243 = vadd.xlane.f32.xlu0 %v2242
    %v2244 = vpop.xlane.xlu0 %2243
    %v2245 = vmul.f32 %v2223, %v2059
    %v2246 = vmul.f32 %v2226, %v2060
    %v2247 = vmul.f32 %v2229, %v2061
    %v2248 = vmul.f32 %v2232, %v2062
    %v2249 = vmul.f32 %v2235, %v2063
    %v2250 = vmul.f32 %v2238, %v2064
    %v2251 = vmul.f32 %v2241, %v2065
    %v2252 = vmul.f32 %v2244, %v2066
    %2261 = vrot.lane.b32.xlu0 %v2245, 8
    %v2262 = vpop.permute.xlu0 %2261
    %2263 = vrot.lane.b32.xlu0 %v2246, 8
    %v2264 = vpop.permute.xlu0 %2263
    %2265 = vrot.lane.b32.xlu0 %v2247, 8
    %v2266 = vpop.permute.xlu0 %2265
    %2267 = vrot.lane.b32.xlu0 %v2248, 8
    %v2268 = vpop.permute.xlu0 %2267
    %2269 = vrot.lane.b32.xlu0 %v2249, 8
    %v2270 = vpop.permute.xlu0 %2269
    %2271 = vrot.lane.b32.xlu0 %v2250, 8
    %v2272 = vpop.permute.xlu0 %2271
    %2273 = vrot.lane.b32.xlu0 %v2251, 8
    %v2274 = vpop.permute.xlu0 %2273
    %2275 = vrot.lane.b32.xlu0 %v2252, 8
    %v2276 = vpop.permute.xlu0 %2275
    %vm2285 = vcmask 64512
    %v2286 = vsel %vm2285, %v2100, %v2262
    %v2287 = vsel %vm2285, %v2101, %v2264
    %v2288 = vsel %vm2285, %v2102, %v2266
    %v2289 = vsel %vm2285, %v2103, %v2268
    %v2290 = vsel %vm2285, %v2104, %v2270
    %v2291 = vsel %vm2285, %v2105, %v2272
    %v2292 = vsel %vm2285, %v2106, %v2274
    %v2293 = vsel %vm2285, %v2107, %v2276
    %v2294 = vpack.c.bf16 %v2287, %v2286
    %v2295 = vpack.c.bf16 %v2289, %v2288
    %v2296 = vpack.c.bf16 %v2291, %v2290
    %v2297 = vpack.c.bf16 %v2293, %v2292
    %v2298 = vlaneseq
    %v2299 = vshrl.u32 %v2298, 7
    %v2300 = vmul.u32 %v2299, 8
    %vm2301 = vcmp.ge.s32.totalorder %v364, %v2300
    %v2302 = vadd.s32 %v2300, 8
    %vm2303 = vcmp.lt.s32.totalorder %v364, %v2302
    %vm2304 = vmand %vm2301, %vm2303
    %v2305 = vsel %vm2304, 1, 0
    %v2306 = vcvt.s32.f32 %v2305
    %v2307 = vpack.c.bf16 %v2306, %v2306
    %vm2308 = vcmask 523264
    %v2310 = vsel %vm2308, %v2307, 0
    %2312 = vmatpush.bf16.msra.mxu0 0
    %2313 = vmatpush.bf16.msra.mxu0 0
    %2314 = vmatpush.bf16.msra.mxu0 0
    %2315 = vmatpush.bf16.msra.mxu0 0
    %2316 = vmatpush.bf16.msra.mxu0 %v2297
    %2317 = vmatpush.bf16.msra.mxu0 %v2296
    %2318 = vmatpush.bf16.msra.mxu0 %v2295
    %2319 = vmatpush.bf16.msra.mxu0 %v2294
    %2320 = vmatmul.bf16.gmra.mxu0 %v2310
    %v2321 = vpop.f32.mrf.mxu0
    %v2322 = vadd.f32 0.0, %v2321
    %v2323 = vpop.f32.mrf.mxu0
    %2324 = vdwg.mxu0
    %vm2325 = vcmask 130048
    %2326 = vst.msk [vmem:[#allocation2] sm:$0xff] %vm2325, %v2322
    // Predicated region
    $region18: #{tpu_custom_call.1} parent=1 // pred_check
      _
    $region19: #{tpu_custom_call.1} parent=1 // pred_check_branch
      %2328 = sbr.rel (0) target = $region21
    $region20: #{tpu_custom_call.1} parent=1 // pred_region
      %2330 = vsyncadd [#allocation3], 0
      %s2332 = sshll.u32 [#allocation2], 4
      %s2333 = int_to_ptr.vmem [resolvable:$true] %s2332
      %s2334 = sshll.u32 %s4, 4
      %s2335 = int_to_ptr.hbm [resolvable:$true] %s2334
      %2337 = dma.vmem_to_hbm [thread:$0]  %s2333, 128, %s2335, [#allocation3]
    $region21: #{tpu_custom_call.1} parent=1 // pred_fallthru
      _
    // Predicated region
    $region22: #{tpu_custom_call.1} parent=1 // pred_check
      _
    $region23: #{tpu_custom_call.1} parent=1 // pred_check_branch
      %2339 = sbr.rel (0) target = $region25
    $region24: #{tpu_custom_call.1} parent=1 // pred_region
      %2341 = dma.done [#allocation3], 128
    $region25: #{tpu_custom_call.1} parent=1 // pred_fallthru
      _
    %2342 = vsyncpa [#allocation3], 1

</llo_original>
